<compile_context>
chip_gen: v5e
topology: v5e:2x2
jax: 0.10.0
libtpu: 0.0.40
codegen_flags: <defaults>
</compile_context>

<pallas_src>
import jax
import jax.numpy as jnp
from jax.experimental import pallas as pl
from jax.experimental.pallas import tpu as pltpu

C_FEAT = 576   # mobilenet_v3_small.features output channels
C_MID = 128    # 1x1 conv output channels


def rgbd_head_kernel(rgb_ref, hha_ref, w1_ref, b1_ref, w2_ref, b2_ref, out_ref):
    # rgb_ref / hha_ref : (Bt, 576, HW)  NCHW-native feature-map tiles
    # w1_ref            : (576, 128)     1x1-conv weight, (Cin, Cout)
    # b1_ref            : (1, 128)
    # w2_ref            : (128, NC)      Linear weight, (Cin, Cout)
    # b2_ref            : (1, NC)
    # out_ref           : (Bt, NC)
    hw = rgb_ref.shape[-1]

    # Pool first (exact: avg-pool and 1x1 conv are linear, ReLU is after the pool).
    # Upcast per tile so bf16 inputs still accumulate in f32.
    s_rgb = jnp.sum(rgb_ref[...].astype(jnp.float32), axis=-1)        # (Bt, 576)
    s_hha = jnp.sum(hha_ref[...].astype(jnp.float32), axis=-1)        # (Bt, 576)
    # Fold the /2 fusion average and the /HW pooling into one scalar on the tiny pooled vector.
    pooled = (s_rgb + s_hha) * (0.5 / hw)                             # (Bt, 576)

    conv = jnp.dot(pooled, w1_ref[...],
                   preferred_element_type=jnp.float32) + b1_ref[...]  # (Bt, 128)
    act = jnp.maximum(conv, 0.0)                                      # ReLU
    logits = jnp.dot(act, w2_ref[...],
                     preferred_element_type=jnp.float32) + b2_ref[...]  # (Bt, NC)
    out_ref[...] = logits.astype(out_ref.dtype)


def _pick_batch_tile(B, C, HW, elem_bytes, vmem_budget_bytes=12 * 1024 * 1024):
    """Largest batch tile that (a) divides B, (b) keeps 2 inputs x 2 pipeline buffers within a
    conservative VMEM budget (safe on v7x's 64 MiB), and (c) is a legal sublane block for the
    (Bt, NC) output (multiple of 8, or the whole batch)."""
    lane_hw = max(HW, 128)                       # trailing dim pads to 128 lanes in VMEM
    per_image = 4 * C * lane_hw * elem_bytes     # 2 inputs x double-buffered
    cap = max(1, vmem_budget_bytes // per_image)
    if B <= cap:
        return B
    for bt in range(min(cap, B), 0, -1):
        if B % bt == 0 and bt % 8 == 0:
            return bt
    return B


def rgbd_head(x_rgb_nchw, x_hha_nchw, w1, b1, w2, b2):
    """Fused RGBDnet head.

    x_*_nchw : (B, 576, H, W) feature maps (PyTorch NCHW convention), f32 or bf16
    w1 : (576, 128)   b1 : (128,)
    w2 : (128, NC)    b2 : (NC,)
    returns   : (B, NC) float32 logits
    """
    B, C, H, W = x_rgb_nchw.shape
    assert C == C_FEAT
    HW = H * W
    num_classes = w2.shape[1]

    # Keep the backbone's NCHW layout: flattening (H, W) -> HW is a free, contiguous reshape
    # (no HBM transpose).
    rgb = x_rgb_nchw.reshape(B, C, HW)
    hha = x_hha_nchw.reshape(B, C, HW)
    b1r = b1.reshape(1, C_MID)
    b2r = b2.reshape(1, num_classes)

    elem_bytes = jnp.dtype(rgb.dtype).itemsize
    bt = _pick_batch_tile(B, C, HW, elem_bytes)

    grid_spec = pltpu.PrefetchScalarGridSpec(
        num_scalar_prefetch=0,
        grid=(B // bt,),
        in_specs=[
            pl.BlockSpec((bt, C, HW), lambda b: (b, 0, 0)),
            pl.BlockSpec((bt, C, HW), lambda b: (b, 0, 0)),
            pl.BlockSpec((C, C_MID), lambda b: (0, 0)),
            pl.BlockSpec((1, C_MID), lambda b: (0, 0)),
            pl.BlockSpec((C_MID, num_classes), lambda b: (0, 0)),
            pl.BlockSpec((1, num_classes), lambda b: (0, 0)),
        ],
        out_specs=pl.BlockSpec((bt, num_classes), lambda b: (b, 0)),
    )

    return pl.pallas_call(
        rgbd_head_kernel,
        out_shape=jax.ShapeDtypeStruct((B, num_classes), jnp.float32),
        grid_spec=grid_spec,
        compiler_params=pltpu.CompilerParams(
            dimension_semantics=("parallel",),        # batch tiles shard across v7x's 2 TCs
            vmem_limit_bytes=32 * 1024 * 1024,
        ),
    )(rgb, hha, w1, b1r, w2, b2r)


def rgbd_head_reference(x_rgb_nchw, x_hha_nchw, w1, b1, w2, b2):
    """Plain-JAX reference matching the PyTorch forward."""
    fused = (x_rgb_nchw + x_hha_nchw) * 0.5                            # (B, 576, H, W)
    conv = jnp.einsum('bchw,co->bohw', fused, w1) + b1[None, :, None, None]
    pooled = jnp.mean(conv, axis=(2, 3))                               # AvgPool(1) + Flatten
    act = jnp.maximum(pooled, 0.0)                                     # ReLU
    return act @ w2 + b2[None, :]                                      # Linear


if __name__ == "__main__":
    B, H, W = 2, 4, 4            # small spatial (mobilenet_v3_small at 224 input would give 7x7)
    num_classes = 10

    key = jax.random.PRNGKey(0)
    k_rgb, k_hha, k_w1, k_b1, k_w2, k_b2 = jax.random.split(key, 6)

    # Synthetic backbone feature maps (what EmbeddingNet would have produced), NCHW.
    x_rgb = jax.random.normal(k_rgb, (B, C_FEAT, H, W), dtype=jnp.float32)
    x_hha = jax.random.normal(k_hha, (B, C_FEAT, H, W), dtype=jnp.float32)

    # Deterministic parameter init (Conv2d(576,128,1) and Linear(128,num_classes)).
    w1 = jax.random.normal(k_w1, (C_FEAT, C_MID), dtype=jnp.float32) * 0.02
    b1 = jax.random.normal(k_b1, (C_MID,), dtype=jnp.float32) * 0.02
    w2 = jax.random.normal(k_w2, (C_MID, num_classes), dtype=jnp.float32) * 0.02
    b2 = jax.random.normal(k_b2, (num_classes,), dtype=jnp.float32) * 0.02

    ref = rgbd_head_reference(x_rgb, x_hha, w1, b1, w2, b2)

    # f32 feature path — exact check.
    out = jax.block_until_ready(rgbd_head(x_rgb, x_hha, w1, b1, w2, b2))
    assert out.shape == (B, num_classes)
    assert jnp.allclose(out, ref, atol=1e-4, rtol=1e-4), "f32 mismatch vs reference"

    # bf16 feature path (what a bf16 backbone would feed) — halves the kernel's HBM traffic;
    # accumulation stays in f32 inside the kernel, so only input rounding error remains.
    out_bf16 = jax.block_until_ready(
        rgbd_head(x_rgb.astype(jnp.bfloat16), x_hha.astype(jnp.bfloat16), w1, b1, w2, b2))
    assert jnp.allclose(out_bf16, ref, atol=5e-3, rtol=5e-2), "bf16 mismatch vs reference"

    print("KERNEL_OK")
</pallas_src>

<mosaic_0001>
module attributes {stable_mosaic.version = 11 : i64} {
  func.func @rgbd_head_kernel(%arg0: i32, %arg1: memref<2x576x16xf32, #tpu.memory_space<vmem>>, %arg2: memref<2x576x16xf32, #tpu.memory_space<vmem>>, %arg3: memref<576x128xf32, #tpu.memory_space<vmem>>, %arg4: memref<1x128xf32, #tpu.memory_space<vmem>>, %arg5: memref<128x10xf32, #tpu.memory_space<vmem>>, %arg6: memref<1x10xf32, #tpu.memory_space<vmem>>, %arg7: memref<2x10xf32, #tpu.memory_space<vmem>>) attributes {dimension_semantics = [#tpu.dimension_semantics<parallel>], iteration_bounds = array<i64: 1>, scalar_prefetch = 0 : i64, scratch_operands = 0 : i64, tpu.core_type = #tpu.core_type<tc>, window_params = [{transform_indices = @transform_0, window_bounds = array<i64: 2, 576, 16>}, {transform_indices = @transform_1, window_bounds = array<i64: 2, 576, 16>}, {pipeline_mode = #tpu.pipeline_mode<synchronous>, transform_indices = @transform_2, window_bounds = array<i64: 576, 128>}, {pipeline_mode = #tpu.pipeline_mode<synchronous>, transform_indices = @transform_3, window_bounds = array<i64: 1, 128>}, {pipeline_mode = #tpu.pipeline_mode<synchronous>, transform_indices = @transform_4, window_bounds = array<i64: 128, 10>}, {pipeline_mode = #tpu.pipeline_mode<synchronous>, transform_indices = @transform_5, window_bounds = array<i64: 1, 10>}, {transform_indices = @transform_6, window_bounds = array<i64: 2, 10>}]} {
    %c0 = arith.constant 0 : index
    %c0_0 = arith.constant 0 : index
    %c0_1 = arith.constant 0 : index
    %0 = vector.load %arg1[%c0, %c0_0, %c0_1] : memref<2x576x16xf32, #tpu.memory_space<vmem>>, vector<2x576x16xf32>
    %cst = arith.constant dense<0.000000e+00> : vector<2x576xf32>
    %1 = vector.multi_reduction <add>, %0, %cst [2] : vector<2x576x16xf32> to vector<2x576xf32>
    %c0_2 = arith.constant 0 : index
    %c0_3 = arith.constant 0 : index
    %c0_4 = arith.constant 0 : index
    %2 = vector.load %arg2[%c0_2, %c0_3, %c0_4] : memref<2x576x16xf32, #tpu.memory_space<vmem>>, vector<2x576x16xf32>
    %cst_5 = arith.constant dense<0.000000e+00> : vector<2x576xf32>
    %3 = vector.multi_reduction <add>, %2, %cst_5 [2] : vector<2x576x16xf32> to vector<2x576xf32>
    %4 = arith.addf %1, %3 : vector<2x576xf32>
    %cst_6 = arith.constant 3.125000e-02 : f32
    %5 = vector.broadcast %cst_6 : f32 to vector<2x576xf32>
    %6 = arith.mulf %4, %5 : vector<2x576xf32>
    %c0_7 = arith.constant 0 : index
    %c0_8 = arith.constant 0 : index
    %7 = vector.load %arg3[%c0_7, %c0_8] : memref<576x128xf32, #tpu.memory_space<vmem>>, vector<576x128xf32>
    %cst_9 = arith.constant dense<0.000000e+00> : vector<2x128xf32>
    %8 = tpu.matmul %6, %7, %cst_9 {dimension_numbers = #tpu.dot_dimension_numbers<[1], [0], [0], [1], [0, 0, 1, 1], [], []>} : vector<2x576xf32>, vector<576x128xf32>, vector<2x128xf32> -> vector<2x128xf32>
    %c0_10 = arith.constant 0 : index
    %c0_11 = arith.constant 0 : index
    %9 = vector.load %arg4[%c0_10, %c0_11] : memref<1x128xf32, #tpu.memory_space<vmem>>, vector<1x128xf32>
    %10 = vector.broadcast %9 : vector<1x128xf32> to vector<2x128xf32>
    %11 = arith.addf %8, %10 : vector<2x128xf32>
    %cst_12 = arith.constant 0.000000e+00 : f32
    %12 = vector.broadcast %cst_12 : f32 to vector<2x128xf32>
    %13 = arith.maximumf %11, %12 : vector<2x128xf32>
    %c0_13 = arith.constant 0 : index
    %c0_14 = arith.constant 0 : index
    %14 = vector.load %arg5[%c0_13, %c0_14] : memref<128x10xf32, #tpu.memory_space<vmem>>, vector<128x10xf32>
    %cst_15 = arith.constant dense<0.000000e+00> : vector<2x10xf32>
    %15 = tpu.matmul %13, %14, %cst_15 {dimension_numbers = #tpu.dot_dimension_numbers<[1], [0], [0], [1], [0, 0, 1, 1], [], []>} : vector<2x128xf32>, vector<128x10xf32>, vector<2x10xf32> -> vector<2x10xf32>
    %c0_16 = arith.constant 0 : index
    %c0_17 = arith.constant 0 : index
    %16 = vector.load %arg6[%c0_16, %c0_17] : memref<1x10xf32, #tpu.memory_space<vmem>>, vector<1x10xf32>
    %17 = vector.broadcast %16 : vector<1x10xf32> to vector<2x10xf32>
    %18 = arith.addf %15, %17 : vector<2x10xf32>
    %c0_18 = arith.constant 0 : index
    %c0_19 = arith.constant 0 : index
    %19 = vector.load %arg7[%c0_18, %c0_19] : memref<2x10xf32, #tpu.memory_space<vmem>>, vector<2x10xf32>
    tpu.vector_store %arg7[%c0_18, %c0_19], %18 {strides = array<i32>} : memref<2x10xf32, #tpu.memory_space<vmem>>, vector<2x10xf32>,
    return
  }
  func.func @transform_0(%arg0: i32) -> (i32, i32, i32) {
    %c0_i32 = arith.constant 0 : i32
    %c0_i32_0 = arith.constant 0 : i32
    %c0_i32_1 = arith.constant 0 : i32
    return %arg0, %c0_i32, %c0_i32_0 : i32, i32, i32
  }
  func.func @transform_1(%arg0: i32) -> (i32, i32, i32) {
    %c0_i32 = arith.constant 0 : i32
    %c0_i32_0 = arith.constant 0 : i32
    %c0_i32_1 = arith.constant 0 : i32
    return %arg0, %c0_i32, %c0_i32_0 : i32, i32, i32
  }
  func.func @transform_2(%arg0: i32) -> (i32, i32) {
    %c0_i32 = arith.constant 0 : i32
    %c0_i32_0 = arith.constant 0 : i32
    %c0_i32_1 = arith.constant 0 : i32
    return %c0_i32, %c0_i32_0 : i32, i32
  }
  func.func @transform_3(%arg0: i32) -> (i32, i32) {
    %c0_i32 = arith.constant 0 : i32
    %c0_i32_0 = arith.constant 0 : i32
    %c0_i32_1 = arith.constant 0 : i32
    return %c0_i32, %c0_i32_0 : i32, i32
  }
  func.func @transform_4(%arg0: i32) -> (i32, i32) {
    %c0_i32 = arith.constant 0 : i32
    %c0_i32_0 = arith.constant 0 : i32
    %c0_i32_1 = arith.constant 0 : i32
    return %c0_i32, %c0_i32_0 : i32, i32
  }
  func.func @transform_5(%arg0: i32) -> (i32, i32) {
    %c0_i32 = arith.constant 0 : i32
    %c0_i32_0 = arith.constant 0 : i32
    %c0_i32_1 = arith.constant 0 : i32
    return %c0_i32, %c0_i32_0 : i32, i32
  }
  func.func @transform_6(%arg0: i32) -> (i32, i32) {
    %c0_i32 = arith.constant 0 : i32
    %c0_i32_0 = arith.constant 0 : i32
    return %arg0, %c0_i32 : i32, i32
  }
}

</mosaic_0001>

<llo_original>
// kernel: tpu_custom_call.1
$region0: #{tpu_custom_call.1}
  #allocation0 [shape = 'u32[]', space=smem, size = 0x4, offset = 0x4, fixed_abs, tag = 'smem constant byte address 0x4 - core index']
  #allocation1 [shape = 'u32[72,128]{1,0:T(1,128)}', space=vmem, size = 0x9000, scoped, tag = 'internal scratch']
  %s0 = inlined_call_operand.vmem [shape: f32[2,576,16], index: 0, kind: input, shape index: {}]
  %s1 = inlined_call_operand.vmem [shape: f32[2,576,16], index: 1, kind: input, shape index: {}]
  %s2 = inlined_call_operand.vmem [shape: f32[576,128], index: 2, kind: input, shape index: {}]
  %s3 = inlined_call_operand.vmem [shape: f32[1,128], index: 3, kind: input, shape index: {}]
  %s4 = inlined_call_operand.vmem [shape: f32[128,10], index: 4, kind: input, shape index: {}]
  %s5 = inlined_call_operand.vmem [shape: f32[1,10], index: 5, kind: input, shape index: {}]
  %s6 = inlined_call_operand.hbm [shape: f32[2,10], index: 6, kind: output, shape index: {}]
  %s7 = sld [smem:[#allocation0]]
  $region34: #{tpu_custom_call.1} parent=0
    _
  %s9 = ssub.s32 1, %s7
  %s10 = scalar_select 0, %s9, %s7
  $region1: #{tpu_custom_call.1} parent=0
    #allocation2 [shape = 'u8[1024]{0}', space=vmem, size = 0x400, scoped, tag = 'output window, operand 0, single buffered']
    #allocation3 [shape = 's32[1]{0}', space=sflag, size = 0x4, scoped, tag = 'scoped memory for tpu_custom_call.1']
    %11 = vsyncpa [#allocation3], 0
    // Predicated region
    $region2: #{tpu_custom_call.1} parent=1 // pred_check
      _
    $region3: #{tpu_custom_call.1} parent=1 // pred_check_branch
      %13 = sbr.rel (0) target = $region5
    $region4: #{tpu_custom_call.1} parent=1 // pred_region
      _
    $region5: #{tpu_custom_call.1} parent=1 // pred_fallthru
      _
    // Predicated region
    $region6: #{tpu_custom_call.1} parent=1 // pred_check
      _
    $region7: #{tpu_custom_call.1} parent=1 // pred_check_branch
      %15 = sbr.rel (0) target = $region9
    $region8: #{tpu_custom_call.1} parent=1 // pred_region
      _
    $region9: #{tpu_custom_call.1} parent=1 // pred_fallthru
      _
    // Predicated region
    $region10: #{tpu_custom_call.1} parent=1 // pred_check
      _
    $region11: #{tpu_custom_call.1} parent=1 // pred_check_branch
      %17 = sbr.rel (0) target = $region13
    $region12: #{tpu_custom_call.1} parent=1 // pred_region
      _
    $region13: #{tpu_custom_call.1} parent=1 // pred_fallthru
      _
    // Predicated region
    $region14: #{tpu_custom_call.1} parent=1 // pred_check
      _
    $region15: #{tpu_custom_call.1} parent=1 // pred_check_branch
      %19 = sbr.rel (0) target = $region17
    $region16: #{tpu_custom_call.1} parent=1 // pred_region
      _
    $region17: #{tpu_custom_call.1} parent=1 // pred_fallthru
      _
    // Predicated region
    $region18: #{tpu_custom_call.1} parent=1 // pred_check
      _
    $region19: #{tpu_custom_call.1} parent=1 // pred_check_branch
      %21 = sbr.rel (0) target = $region21
    $region20: #{tpu_custom_call.1} parent=1 // pred_region
      _
    $region21: #{tpu_custom_call.1} parent=1 // pred_fallthru
      _
    // Predicated region
    $region22: #{tpu_custom_call.1} parent=1 // pred_check
      _
    $region23: #{tpu_custom_call.1} parent=1 // pred_check_branch
      %23 = sbr.rel (0) target = $region25
    $region24: #{tpu_custom_call.1} parent=1 // pred_region
      _
    $region25: #{tpu_custom_call.1} parent=1 // pred_fallthru
      _
    %v24 = vld [vmem:[%s0] sm:$0xff]
    %v25 = vld [vmem:[%s0 + $0x8] sm:$0xff]
    %v26 = vld [vmem:[%s0 + $0x10] sm:$0xff]
    %v27 = vld [vmem:[%s0 + $0x18] sm:$0xff]
    %v28 = vld [vmem:[%s0 + $0x20] sm:$0xff]
    %v29 = vld [vmem:[%s0 + $0x28] sm:$0xff]
    %v30 = vld [vmem:[%s0 + $0x30] sm:$0xff]
    %v31 = vld [vmem:[%s0 + $0x38] sm:$0xff]
    %v32 = vld [vmem:[%s0 + $0x40] sm:$0xff]
    %v33 = vld [vmem:[%s0 + $0x48] sm:$0xff]
    %v34 = vld [vmem:[%s0 + $0x50] sm:$0xff]
    %v35 = vld [vmem:[%s0 + $0x58] sm:$0xff]
    %v36 = vld [vmem:[%s0 + $0x60] sm:$0xff]
    %v37 = vld [vmem:[%s0 + $0x68] sm:$0xff]
    %v38 = vld [vmem:[%s0 + $0x70] sm:$0xff]
    %v39 = vld [vmem:[%s0 + $0x78] sm:$0xff]
    %v40 = vld [vmem:[%s0 + $0x80] sm:$0xff]
    %v41 = vld [vmem:[%s0 + $0x88] sm:$0xff]
    %v42 = vld [vmem:[%s0 + $0x90] sm:$0xff]
    %v43 = vld [vmem:[%s0 + $0x98] sm:$0xff]
    %v44 = vld [vmem:[%s0 + $0xa0] sm:$0xff]
    %v45 = vld [vmem:[%s0 + $0xa8] sm:$0xff]
    %v46 = vld [vmem:[%s0 + $0xb0] sm:$0xff]
    %v47 = vld [vmem:[%s0 + $0xb8] sm:$0xff]
    %v48 = vld [vmem:[%s0 + $0xc0] sm:$0xff]
    %v49 = vld [vmem:[%s0 + $0xc8] sm:$0xff]
    %v50 = vld [vmem:[%s0 + $0xd0] sm:$0xff]
    %v51 = vld [vmem:[%s0 + $0xd8] sm:$0xff]
    %v52 = vld [vmem:[%s0 + $0xe0] sm:$0xff]
    %v53 = vld [vmem:[%s0 + $0xe8] sm:$0xff]
    %v54 = vld [vmem:[%s0 + $0xf0] sm:$0xff]
    %v55 = vld [vmem:[%s0 + $0xf8] sm:$0xff]
    %v56 = vld [vmem:[%s0 + $0x100] sm:$0xff]
    %v57 = vld [vmem:[%s0 + $0x108] sm:$0xff]
    %v58 = vld [vmem:[%s0 + $0x110] sm:$0xff]
    %v59 = vld [vmem:[%s0 + $0x118] sm:$0xff]
    %v60 = vld [vmem:[%s0 + $0x120] sm:$0xff]
    %v61 = vld [vmem:[%s0 + $0x128] sm:$0xff]
    %v62 = vld [vmem:[%s0 + $0x130] sm:$0xff]
    %v63 = vld [vmem:[%s0 + $0x138] sm:$0xff]
    %v64 = vld [vmem:[%s0 + $0x140] sm:$0xff]
    %v65 = vld [vmem:[%s0 + $0x148] sm:$0xff]
    %v66 = vld [vmem:[%s0 + $0x150] sm:$0xff]
    %v67 = vld [vmem:[%s0 + $0x158] sm:$0xff]
    %v68 = vld [vmem:[%s0 + $0x160] sm:$0xff]
    %v69 = vld [vmem:[%s0 + $0x168] sm:$0xff]
    %v70 = vld [vmem:[%s0 + $0x170] sm:$0xff]
    %v71 = vld [vmem:[%s0 + $0x178] sm:$0xff]
    %v72 = vld [vmem:[%s0 + $0x180] sm:$0xff]
    %v73 = vld [vmem:[%s0 + $0x188] sm:$0xff]
    %v74 = vld [vmem:[%s0 + $0x190] sm:$0xff]
    %v75 = vld [vmem:[%s0 + $0x198] sm:$0xff]
    %v76 = vld [vmem:[%s0 + $0x1a0] sm:$0xff]
    %v77 = vld [vmem:[%s0 + $0x1a8] sm:$0xff]
    %v78 = vld [vmem:[%s0 + $0x1b0] sm:$0xff]
    %v79 = vld [vmem:[%s0 + $0x1b8] sm:$0xff]
    %v80 = vld [vmem:[%s0 + $0x1c0] sm:$0xff]
    %v81 = vld [vmem:[%s0 + $0x1c8] sm:$0xff]
    %v82 = vld [vmem:[%s0 + $0x1d0] sm:$0xff]
    %v83 = vld [vmem:[%s0 + $0x1d8] sm:$0xff]
    %v84 = vld [vmem:[%s0 + $0x1e0] sm:$0xff]
    %v85 = vld [vmem:[%s0 + $0x1e8] sm:$0xff]
    %v86 = vld [vmem:[%s0 + $0x1f0] sm:$0xff]
    %v87 = vld [vmem:[%s0 + $0x1f8] sm:$0xff]
    %v88 = vld [vmem:[%s0 + $0x200] sm:$0xff]
    %v89 = vld [vmem:[%s0 + $0x208] sm:$0xff]
    %v90 = vld [vmem:[%s0 + $0x210] sm:$0xff]
    %v91 = vld [vmem:[%s0 + $0x218] sm:$0xff]
    %v92 = vld [vmem:[%s0 + $0x220] sm:$0xff]
    %v93 = vld [vmem:[%s0 + $0x228] sm:$0xff]
    %v94 = vld [vmem:[%s0 + $0x230] sm:$0xff]
    %v95 = vld [vmem:[%s0 + $0x238] sm:$0xff]
    %v96 = vld [vmem:[%s0 + $0x240] sm:$0xff]
    %v97 = vld [vmem:[%s0 + $0x248] sm:$0xff]
    %v98 = vld [vmem:[%s0 + $0x250] sm:$0xff]
    %v99 = vld [vmem:[%s0 + $0x258] sm:$0xff]
    %v100 = vld [vmem:[%s0 + $0x260] sm:$0xff]
    %v101 = vld [vmem:[%s0 + $0x268] sm:$0xff]
    %v102 = vld [vmem:[%s0 + $0x270] sm:$0xff]
    %v103 = vld [vmem:[%s0 + $0x278] sm:$0xff]
    %v104 = vld [vmem:[%s0 + $0x280] sm:$0xff]
    %v105 = vld [vmem:[%s0 + $0x288] sm:$0xff]
    %v106 = vld [vmem:[%s0 + $0x290] sm:$0xff]
    %v107 = vld [vmem:[%s0 + $0x298] sm:$0xff]
    %v108 = vld [vmem:[%s0 + $0x2a0] sm:$0xff]
    %v109 = vld [vmem:[%s0 + $0x2a8] sm:$0xff]
    %v110 = vld [vmem:[%s0 + $0x2b0] sm:$0xff]
    %v111 = vld [vmem:[%s0 + $0x2b8] sm:$0xff]
    %v112 = vld [vmem:[%s0 + $0x2c0] sm:$0xff]
    %v113 = vld [vmem:[%s0 + $0x2c8] sm:$0xff]
    %v114 = vld [vmem:[%s0 + $0x2d0] sm:$0xff]
    %v115 = vld [vmem:[%s0 + $0x2d8] sm:$0xff]
    %v116 = vld [vmem:[%s0 + $0x2e0] sm:$0xff]
    %v117 = vld [vmem:[%s0 + $0x2e8] sm:$0xff]
    %v118 = vld [vmem:[%s0 + $0x2f0] sm:$0xff]
    %v119 = vld [vmem:[%s0 + $0x2f8] sm:$0xff]
    %v120 = vld [vmem:[%s0 + $0x300] sm:$0xff]
    %v121 = vld [vmem:[%s0 + $0x308] sm:$0xff]
    %v122 = vld [vmem:[%s0 + $0x310] sm:$0xff]
    %v123 = vld [vmem:[%s0 + $0x318] sm:$0xff]
    %v124 = vld [vmem:[%s0 + $0x320] sm:$0xff]
    %v125 = vld [vmem:[%s0 + $0x328] sm:$0xff]
    %v126 = vld [vmem:[%s0 + $0x330] sm:$0xff]
    %v127 = vld [vmem:[%s0 + $0x338] sm:$0xff]
    %v128 = vld [vmem:[%s0 + $0x340] sm:$0xff]
    %v129 = vld [vmem:[%s0 + $0x348] sm:$0xff]
    %v130 = vld [vmem:[%s0 + $0x350] sm:$0xff]
    %v131 = vld [vmem:[%s0 + $0x358] sm:$0xff]
    %v132 = vld [vmem:[%s0 + $0x360] sm:$0xff]
    %v133 = vld [vmem:[%s0 + $0x368] sm:$0xff]
    %v134 = vld [vmem:[%s0 + $0x370] sm:$0xff]
    %v135 = vld [vmem:[%s0 + $0x378] sm:$0xff]
    %v136 = vld [vmem:[%s0 + $0x380] sm:$0xff]
    %v137 = vld [vmem:[%s0 + $0x388] sm:$0xff]
    %v138 = vld [vmem:[%s0 + $0x390] sm:$0xff]
    %v139 = vld [vmem:[%s0 + $0x398] sm:$0xff]
    %v140 = vld [vmem:[%s0 + $0x3a0] sm:$0xff]
    %v141 = vld [vmem:[%s0 + $0x3a8] sm:$0xff]
    %v142 = vld [vmem:[%s0 + $0x3b0] sm:$0xff]
    %v143 = vld [vmem:[%s0 + $0x3b8] sm:$0xff]
    %v144 = vld [vmem:[%s0 + $0x3c0] sm:$0xff]
    %v145 = vld [vmem:[%s0 + $0x3c8] sm:$0xff]
    %v146 = vld [vmem:[%s0 + $0x3d0] sm:$0xff]
    %v147 = vld [vmem:[%s0 + $0x3d8] sm:$0xff]
    %v148 = vld [vmem:[%s0 + $0x3e0] sm:$0xff]
    %v149 = vld [vmem:[%s0 + $0x3e8] sm:$0xff]
    %v150 = vld [vmem:[%s0 + $0x3f0] sm:$0xff]
    %v151 = vld [vmem:[%s0 + $0x3f8] sm:$0xff]
    %v152 = vld [vmem:[%s0 + $0x400] sm:$0xff]
    %v153 = vld [vmem:[%s0 + $0x408] sm:$0xff]
    %v154 = vld [vmem:[%s0 + $0x410] sm:$0xff]
    %v155 = vld [vmem:[%s0 + $0x418] sm:$0xff]
    %v156 = vld [vmem:[%s0 + $0x420] sm:$0xff]
    %v157 = vld [vmem:[%s0 + $0x428] sm:$0xff]
    %v158 = vld [vmem:[%s0 + $0x430] sm:$0xff]
    %v159 = vld [vmem:[%s0 + $0x438] sm:$0xff]
    %v160 = vld [vmem:[%s0 + $0x440] sm:$0xff]
    %v161 = vld [vmem:[%s0 + $0x448] sm:$0xff]
    %v162 = vld [vmem:[%s0 + $0x450] sm:$0xff]
    %v163 = vld [vmem:[%s0 + $0x458] sm:$0xff]
    %v164 = vld [vmem:[%s0 + $0x460] sm:$0xff]
    %v165 = vld [vmem:[%s0 + $0x468] sm:$0xff]
    %v166 = vld [vmem:[%s0 + $0x470] sm:$0xff]
    %v167 = vld [vmem:[%s0 + $0x478] sm:$0xff]
    %vm168 = vcmask 130048
    %v169 = vsel %vm168, %v24, 0.0
    %170 = vadd.xlane.f32.xlu0 %v169
    %v171 = vpop.xlane.xlu0 %170
    %v172 = vsel %vm168, %v25, 0.0
    %173 = vadd.xlane.f32.xlu0 %v172
    %v174 = vpop.xlane.xlu0 %173
    %v175 = vsel %vm168, %v26, 0.0
    %176 = vadd.xlane.f32.xlu0 %v175
    %v177 = vpop.xlane.xlu0 %176
    %v178 = vsel %vm168, %v27, 0.0
    %179 = vadd.xlane.f32.xlu0 %v178
    %v180 = vpop.xlane.xlu0 %179
    %v181 = vsel %vm168, %v28, 0.0
    %182 = vadd.xlane.f32.xlu0 %v181
    %v183 = vpop.xlane.xlu0 %182
    %v184 = vsel %vm168, %v29, 0.0
    %185 = vadd.xlane.f32.xlu0 %v184
    %v186 = vpop.xlane.xlu0 %185
    %v187 = vsel %vm168, %v30, 0.0
    %188 = vadd.xlane.f32.xlu0 %v187
    %v189 = vpop.xlane.xlu0 %188
    %v190 = vsel %vm168, %v31, 0.0
    %191 = vadd.xlane.f32.xlu0 %v190
    %v192 = vpop.xlane.xlu0 %191
    %v193 = vsel %vm168, %v32, 0.0
    %194 = vadd.xlane.f32.xlu0 %v193
    %v195 = vpop.xlane.xlu0 %194
    %v196 = vsel %vm168, %v33, 0.0
    %197 = vadd.xlane.f32.xlu0 %v196
    %v198 = vpop.xlane.xlu0 %197
    %v199 = vsel %vm168, %v34, 0.0
    %200 = vadd.xlane.f32.xlu0 %v199
    %v201 = vpop.xlane.xlu0 %200
    %v202 = vsel %vm168, %v35, 0.0
    %203 = vadd.xlane.f32.xlu0 %v202
    %v204 = vpop.xlane.xlu0 %203
    %v205 = vsel %vm168, %v36, 0.0
    %206 = vadd.xlane.f32.xlu0 %v205
    %v207 = vpop.xlane.xlu0 %206
    %v208 = vsel %vm168, %v37, 0.0
    %209 = vadd.xlane.f32.xlu0 %v208
    %v210 = vpop.xlane.xlu0 %209
    %v211 = vsel %vm168, %v38, 0.0
    %212 = vadd.xlane.f32.xlu0 %v211
    %v213 = vpop.xlane.xlu0 %212
    %v214 = vsel %vm168, %v39, 0.0
    %215 = vadd.xlane.f32.xlu0 %v214
    %v216 = vpop.xlane.xlu0 %215
    %v217 = vsel %vm168, %v40, 0.0
    %218 = vadd.xlane.f32.xlu0 %v217
    %v219 = vpop.xlane.xlu0 %218
    %v220 = vsel %vm168, %v41, 0.0
    %221 = vadd.xlane.f32.xlu0 %v220
    %v222 = vpop.xlane.xlu0 %221
    %v223 = vsel %vm168, %v42, 0.0
    %224 = vadd.xlane.f32.xlu0 %v223
    %v225 = vpop.xlane.xlu0 %224
    %v226 = vsel %vm168, %v43, 0.0
    %227 = vadd.xlane.f32.xlu0 %v226
    %v228 = vpop.xlane.xlu0 %227
    %v229 = vsel %vm168, %v44, 0.0
    %230 = vadd.xlane.f32.xlu0 %v229
    %v231 = vpop.xlane.xlu0 %230
    %v232 = vsel %vm168, %v45, 0.0
    %233 = vadd.xlane.f32.xlu0 %v232
    %v234 = vpop.xlane.xlu0 %233
    %v235 = vsel %vm168, %v46, 0.0
    %236 = vadd.xlane.f32.xlu0 %v235
    %v237 = vpop.xlane.xlu0 %236
    %v238 = vsel %vm168, %v47, 0.0
    %239 = vadd.xlane.f32.xlu0 %v238
    %v240 = vpop.xlane.xlu0 %239
    %v241 = vsel %vm168, %v48, 0.0
    %242 = vadd.xlane.f32.xlu0 %v241
    %v243 = vpop.xlane.xlu0 %242
    %v244 = vsel %vm168, %v49, 0.0
    %245 = vadd.xlane.f32.xlu0 %v244
    %v246 = vpop.xlane.xlu0 %245
    %v247 = vsel %vm168, %v50, 0.0
    %248 = vadd.xlane.f32.xlu0 %v247
    %v249 = vpop.xlane.xlu0 %248
    %v250 = vsel %vm168, %v51, 0.0
    %251 = vadd.xlane.f32.xlu0 %v250
    %v252 = vpop.xlane.xlu0 %251
    %v253 = vsel %vm168, %v52, 0.0
    %254 = vadd.xlane.f32.xlu0 %v253
    %v255 = vpop.xlane.xlu0 %254
    %v256 = vsel %vm168, %v53, 0.0
    %257 = vadd.xlane.f32.xlu0 %v256
    %v258 = vpop.xlane.xlu0 %257
    %v259 = vsel %vm168, %v54, 0.0
    %260 = vadd.xlane.f32.xlu0 %v259
    %v261 = vpop.xlane.xlu0 %260
    %v262 = vsel %vm168, %v55, 0.0
    %263 = vadd.xlane.f32.xlu0 %v262
    %v264 = vpop.xlane.xlu0 %263
    %v265 = vsel %vm168, %v56, 0.0
    %266 = vadd.xlane.f32.xlu0 %v265
    %v267 = vpop.xlane.xlu0 %266
    %v268 = vsel %vm168, %v57, 0.0
    %269 = vadd.xlane.f32.xlu0 %v268
    %v270 = vpop.xlane.xlu0 %269
    %v271 = vsel %vm168, %v58, 0.0
    %272 = vadd.xlane.f32.xlu0 %v271
    %v273 = vpop.xlane.xlu0 %272
    %v274 = vsel %vm168, %v59, 0.0
    %275 = vadd.xlane.f32.xlu0 %v274
    %v276 = vpop.xlane.xlu0 %275
    %v277 = vsel %vm168, %v60, 0.0
    %278 = vadd.xlane.f32.xlu0 %v277
    %v279 = vpop.xlane.xlu0 %278
    %v280 = vsel %vm168, %v61, 0.0
    %281 = vadd.xlane.f32.xlu0 %v280
    %v282 = vpop.xlane.xlu0 %281
    %v283 = vsel %vm168, %v62, 0.0
    %284 = vadd.xlane.f32.xlu0 %v283
    %v285 = vpop.xlane.xlu0 %284
    %v286 = vsel %vm168, %v63, 0.0
    %287 = vadd.xlane.f32.xlu0 %v286
    %v288 = vpop.xlane.xlu0 %287
    %v289 = vsel %vm168, %v64, 0.0
    %290 = vadd.xlane.f32.xlu0 %v289
    %v291 = vpop.xlane.xlu0 %290
    %v292 = vsel %vm168, %v65, 0.0
    %293 = vadd.xlane.f32.xlu0 %v292
    %v294 = vpop.xlane.xlu0 %293
    %v295 = vsel %vm168, %v66, 0.0
    %296 = vadd.xlane.f32.xlu0 %v295
    %v297 = vpop.xlane.xlu0 %296
    %v298 = vsel %vm168, %v67, 0.0
    %299 = vadd.xlane.f32.xlu0 %v298
    %v300 = vpop.xlane.xlu0 %299
    %v301 = vsel %vm168, %v68, 0.0
    %302 = vadd.xlane.f32.xlu0 %v301
    %v303 = vpop.xlane.xlu0 %302
    %v304 = vsel %vm168, %v69, 0.0
    %305 = vadd.xlane.f32.xlu0 %v304
    %v306 = vpop.xlane.xlu0 %305
    %v307 = vsel %vm168, %v70, 0.0
    %308 = vadd.xlane.f32.xlu0 %v307
    %v309 = vpop.xlane.xlu0 %308
    %v310 = vsel %vm168, %v71, 0.0
    %311 = vadd.xlane.f32.xlu0 %v310
    %v312 = vpop.xlane.xlu0 %311
    %v313 = vsel %vm168, %v72, 0.0
    %314 = vadd.xlane.f32.xlu0 %v313
    %v315 = vpop.xlane.xlu0 %314
    %v316 = vsel %vm168, %v73, 0.0
    %317 = vadd.xlane.f32.xlu0 %v316
    %v318 = vpop.xlane.xlu0 %317
    %v319 = vsel %vm168, %v74, 0.0
    %320 = vadd.xlane.f32.xlu0 %v319
    %v321 = vpop.xlane.xlu0 %320
    %v322 = vsel %vm168, %v75, 0.0
    %323 = vadd.xlane.f32.xlu0 %v322
    %v324 = vpop.xlane.xlu0 %323
    %v325 = vsel %vm168, %v76, 0.0
    %326 = vadd.xlane.f32.xlu0 %v325
    %v327 = vpop.xlane.xlu0 %326
    %v328 = vsel %vm168, %v77, 0.0
    %329 = vadd.xlane.f32.xlu0 %v328
    %v330 = vpop.xlane.xlu0 %329
    %v331 = vsel %vm168, %v78, 0.0
    %332 = vadd.xlane.f32.xlu0 %v331
    %v333 = vpop.xlane.xlu0 %332
    %v334 = vsel %vm168, %v79, 0.0
    %335 = vadd.xlane.f32.xlu0 %v334
    %v336 = vpop.xlane.xlu0 %335
    %v337 = vsel %vm168, %v80, 0.0
    %338 = vadd.xlane.f32.xlu0 %v337
    %v339 = vpop.xlane.xlu0 %338
    %v340 = vsel %vm168, %v81, 0.0
    %341 = vadd.xlane.f32.xlu0 %v340
    %v342 = vpop.xlane.xlu0 %341
    %v343 = vsel %vm168, %v82, 0.0
    %344 = vadd.xlane.f32.xlu0 %v343
    %v345 = vpop.xlane.xlu0 %344
    %v346 = vsel %vm168, %v83, 0.0
    %347 = vadd.xlane.f32.xlu0 %v346
    %v348 = vpop.xlane.xlu0 %347
    %v349 = vsel %vm168, %v84, 0.0
    %350 = vadd.xlane.f32.xlu0 %v349
    %v351 = vpop.xlane.xlu0 %350
    %v352 = vsel %vm168, %v85, 0.0
    %353 = vadd.xlane.f32.xlu0 %v352
    %v354 = vpop.xlane.xlu0 %353
    %v355 = vsel %vm168, %v86, 0.0
    %356 = vadd.xlane.f32.xlu0 %v355
    %v357 = vpop.xlane.xlu0 %356
    %v358 = vsel %vm168, %v87, 0.0
    %359 = vadd.xlane.f32.xlu0 %v358
    %v360 = vpop.xlane.xlu0 %359
    %v361 = vsel %vm168, %v88, 0.0
    %362 = vadd.xlane.f32.xlu0 %v361
    %v363 = vpop.xlane.xlu0 %362
    %v364 = vsel %vm168, %v89, 0.0
    %365 = vadd.xlane.f32.xlu0 %v364
    %v366 = vpop.xlane.xlu0 %365
    %v367 = vsel %vm168, %v90, 0.0
    %368 = vadd.xlane.f32.xlu0 %v367
    %v369 = vpop.xlane.xlu0 %368
    %v370 = vsel %vm168, %v91, 0.0
    %371 = vadd.xlane.f32.xlu0 %v370
    %v372 = vpop.xlane.xlu0 %371
    %v373 = vsel %vm168, %v92, 0.0
    %374 = vadd.xlane.f32.xlu0 %v373
    %v375 = vpop.xlane.xlu0 %374
    %v376 = vsel %vm168, %v93, 0.0
    %377 = vadd.xlane.f32.xlu0 %v376
    %v378 = vpop.xlane.xlu0 %377
    %v379 = vsel %vm168, %v94, 0.0
    %380 = vadd.xlane.f32.xlu0 %v379
    %v381 = vpop.xlane.xlu0 %380
    %v382 = vsel %vm168, %v95, 0.0
    %383 = vadd.xlane.f32.xlu0 %v382
    %v384 = vpop.xlane.xlu0 %383
    %v385 = vsel %vm168, %v96, 0.0
    %386 = vadd.xlane.f32.xlu0 %v385
    %v387 = vpop.xlane.xlu0 %386
    %v388 = vsel %vm168, %v97, 0.0
    %389 = vadd.xlane.f32.xlu0 %v388
    %v390 = vpop.xlane.xlu0 %389
    %v391 = vsel %vm168, %v98, 0.0
    %392 = vadd.xlane.f32.xlu0 %v391
    %v393 = vpop.xlane.xlu0 %392
    %v394 = vsel %vm168, %v99, 0.0
    %395 = vadd.xlane.f32.xlu0 %v394
    %v396 = vpop.xlane.xlu0 %395
    %v397 = vsel %vm168, %v100, 0.0
    %398 = vadd.xlane.f32.xlu0 %v397
    %v399 = vpop.xlane.xlu0 %398
    %v400 = vsel %vm168, %v101, 0.0
    %401 = vadd.xlane.f32.xlu0 %v400
    %v402 = vpop.xlane.xlu0 %401
    %v403 = vsel %vm168, %v102, 0.0
    %404 = vadd.xlane.f32.xlu0 %v403
    %v405 = vpop.xlane.xlu0 %404
    %v406 = vsel %vm168, %v103, 0.0
    %407 = vadd.xlane.f32.xlu0 %v406
    %v408 = vpop.xlane.xlu0 %407
    %v409 = vsel %vm168, %v104, 0.0
    %410 = vadd.xlane.f32.xlu0 %v409
    %v411 = vpop.xlane.xlu0 %410
    %v412 = vsel %vm168, %v105, 0.0
    %413 = vadd.xlane.f32.xlu0 %v412
    %v414 = vpop.xlane.xlu0 %413
    %v415 = vsel %vm168, %v106, 0.0
    %416 = vadd.xlane.f32.xlu0 %v415
    %v417 = vpop.xlane.xlu0 %416
    %v418 = vsel %vm168, %v107, 0.0
    %419 = vadd.xlane.f32.xlu0 %v418
    %v420 = vpop.xlane.xlu0 %419
    %v421 = vsel %vm168, %v108, 0.0
    %422 = vadd.xlane.f32.xlu0 %v421
    %v423 = vpop.xlane.xlu0 %422
    %v424 = vsel %vm168, %v109, 0.0
    %425 = vadd.xlane.f32.xlu0 %v424
    %v426 = vpop.xlane.xlu0 %425
    %v427 = vsel %vm168, %v110, 0.0
    %428 = vadd.xlane.f32.xlu0 %v427
    %v429 = vpop.xlane.xlu0 %428
    %v430 = vsel %vm168, %v111, 0.0
    %431 = vadd.xlane.f32.xlu0 %v430
    %v432 = vpop.xlane.xlu0 %431
    %v433 = vsel %vm168, %v112, 0.0
    %434 = vadd.xlane.f32.xlu0 %v433
    %v435 = vpop.xlane.xlu0 %434
    %v436 = vsel %vm168, %v113, 0.0
    %437 = vadd.xlane.f32.xlu0 %v436
    %v438 = vpop.xlane.xlu0 %437
    %v439 = vsel %vm168, %v114, 0.0
    %440 = vadd.xlane.f32.xlu0 %v439
    %v441 = vpop.xlane.xlu0 %440
    %v442 = vsel %vm168, %v115, 0.0
    %443 = vadd.xlane.f32.xlu0 %v442
    %v444 = vpop.xlane.xlu0 %443
    %v445 = vsel %vm168, %v116, 0.0
    %446 = vadd.xlane.f32.xlu0 %v445
    %v447 = vpop.xlane.xlu0 %446
    %v448 = vsel %vm168, %v117, 0.0
    %449 = vadd.xlane.f32.xlu0 %v448
    %v450 = vpop.xlane.xlu0 %449
    %v451 = vsel %vm168, %v118, 0.0
    %452 = vadd.xlane.f32.xlu0 %v451
    %v453 = vpop.xlane.xlu0 %452
    %v454 = vsel %vm168, %v119, 0.0
    %455 = vadd.xlane.f32.xlu0 %v454
    %v456 = vpop.xlane.xlu0 %455
    %v457 = vsel %vm168, %v120, 0.0
    %458 = vadd.xlane.f32.xlu0 %v457
    %v459 = vpop.xlane.xlu0 %458
    %v460 = vsel %vm168, %v121, 0.0
    %461 = vadd.xlane.f32.xlu0 %v460
    %v462 = vpop.xlane.xlu0 %461
    %v463 = vsel %vm168, %v122, 0.0
    %464 = vadd.xlane.f32.xlu0 %v463
    %v465 = vpop.xlane.xlu0 %464
    %v466 = vsel %vm168, %v123, 0.0
    %467 = vadd.xlane.f32.xlu0 %v466
    %v468 = vpop.xlane.xlu0 %467
    %v469 = vsel %vm168, %v124, 0.0
    %470 = vadd.xlane.f32.xlu0 %v469
    %v471 = vpop.xlane.xlu0 %470
    %v472 = vsel %vm168, %v125, 0.0
    %473 = vadd.xlane.f32.xlu0 %v472
    %v474 = vpop.xlane.xlu0 %473
    %v475 = vsel %vm168, %v126, 0.0
    %476 = vadd.xlane.f32.xlu0 %v475
    %v477 = vpop.xlane.xlu0 %476
    %v478 = vsel %vm168, %v127, 0.0
    %479 = vadd.xlane.f32.xlu0 %v478
    %v480 = vpop.xlane.xlu0 %479
    %v481 = vsel %vm168, %v128, 0.0
    %482 = vadd.xlane.f32.xlu0 %v481
    %v483 = vpop.xlane.xlu0 %482
    %v484 = vsel %vm168, %v129, 0.0
    %485 = vadd.xlane.f32.xlu0 %v484
    %v486 = vpop.xlane.xlu0 %485
    %v487 = vsel %vm168, %v130, 0.0
    %488 = vadd.xlane.f32.xlu0 %v487
    %v489 = vpop.xlane.xlu0 %488
    %v490 = vsel %vm168, %v131, 0.0
    %491 = vadd.xlane.f32.xlu0 %v490
    %v492 = vpop.xlane.xlu0 %491
    %v493 = vsel %vm168, %v132, 0.0
    %494 = vadd.xlane.f32.xlu0 %v493
    %v495 = vpop.xlane.xlu0 %494
    %v496 = vsel %vm168, %v133, 0.0
    %497 = vadd.xlane.f32.xlu0 %v496
    %v498 = vpop.xlane.xlu0 %497
    %v499 = vsel %vm168, %v134, 0.0
    %500 = vadd.xlane.f32.xlu0 %v499
    %v501 = vpop.xlane.xlu0 %500
    %v502 = vsel %vm168, %v135, 0.0
    %503 = vadd.xlane.f32.xlu0 %v502
    %v504 = vpop.xlane.xlu0 %503
    %v505 = vsel %vm168, %v136, 0.0
    %506 = vadd.xlane.f32.xlu0 %v505
    %v507 = vpop.xlane.xlu0 %506
    %v508 = vsel %vm168, %v137, 0.0
    %509 = vadd.xlane.f32.xlu0 %v508
    %v510 = vpop.xlane.xlu0 %509
    %v511 = vsel %vm168, %v138, 0.0
    %512 = vadd.xlane.f32.xlu0 %v511
    %v513 = vpop.xlane.xlu0 %512
    %v514 = vsel %vm168, %v139, 0.0
    %515 = vadd.xlane.f32.xlu0 %v514
    %v516 = vpop.xlane.xlu0 %515
    %v517 = vsel %vm168, %v140, 0.0
    %518 = vadd.xlane.f32.xlu0 %v517
    %v519 = vpop.xlane.xlu0 %518
    %v520 = vsel %vm168, %v141, 0.0
    %521 = vadd.xlane.f32.xlu0 %v520
    %v522 = vpop.xlane.xlu0 %521
    %v523 = vsel %vm168, %v142, 0.0
    %524 = vadd.xlane.f32.xlu0 %v523
    %v525 = vpop.xlane.xlu0 %524
    %v526 = vsel %vm168, %v143, 0.0
    %527 = vadd.xlane.f32.xlu0 %v526
    %v528 = vpop.xlane.xlu0 %527
    %v529 = vsel %vm168, %v144, 0.0
    %530 = vadd.xlane.f32.xlu0 %v529
    %v531 = vpop.xlane.xlu0 %530
    %v532 = vsel %vm168, %v145, 0.0
    %533 = vadd.xlane.f32.xlu0 %v532
    %v534 = vpop.xlane.xlu0 %533
    %v535 = vsel %vm168, %v146, 0.0
    %536 = vadd.xlane.f32.xlu0 %v535
    %v537 = vpop.xlane.xlu0 %536
    %v538 = vsel %vm168, %v147, 0.0
    %539 = vadd.xlane.f32.xlu0 %v538
    %v540 = vpop.xlane.xlu0 %539
    %v541 = vsel %vm168, %v148, 0.0
    %542 = vadd.xlane.f32.xlu0 %v541
    %v543 = vpop.xlane.xlu0 %542
    %v544 = vsel %vm168, %v149, 0.0
    %545 = vadd.xlane.f32.xlu0 %v544
    %v546 = vpop.xlane.xlu0 %545
    %v547 = vsel %vm168, %v150, 0.0
    %548 = vadd.xlane.f32.xlu0 %v547
    %v549 = vpop.xlane.xlu0 %548
    %v550 = vsel %vm168, %v151, 0.0
    %551 = vadd.xlane.f32.xlu0 %v550
    %v552 = vpop.xlane.xlu0 %551
    %v553 = vsel %vm168, %v152, 0.0
    %554 = vadd.xlane.f32.xlu0 %v553
    %v555 = vpop.xlane.xlu0 %554
    %v556 = vsel %vm168, %v153, 0.0
    %557 = vadd.xlane.f32.xlu0 %v556
    %v558 = vpop.xlane.xlu0 %557
    %v559 = vsel %vm168, %v154, 0.0
    %560 = vadd.xlane.f32.xlu0 %v559
    %v561 = vpop.xlane.xlu0 %560
    %v562 = vsel %vm168, %v155, 0.0
    %563 = vadd.xlane.f32.xlu0 %v562
    %v564 = vpop.xlane.xlu0 %563
    %v565 = vsel %vm168, %v156, 0.0
    %566 = vadd.xlane.f32.xlu0 %v565
    %v567 = vpop.xlane.xlu0 %566
    %v568 = vsel %vm168, %v157, 0.0
    %569 = vadd.xlane.f32.xlu0 %v568
    %v570 = vpop.xlane.xlu0 %569
    %v571 = vsel %vm168, %v158, 0.0
    %572 = vadd.xlane.f32.xlu0 %v571
    %v573 = vpop.xlane.xlu0 %572
    %v574 = vsel %vm168, %v159, 0.0
    %575 = vadd.xlane.f32.xlu0 %v574
    %v576 = vpop.xlane.xlu0 %575
    %v577 = vsel %vm168, %v160, 0.0
    %578 = vadd.xlane.f32.xlu0 %v577
    %v579 = vpop.xlane.xlu0 %578
    %v580 = vsel %vm168, %v161, 0.0
    %581 = vadd.xlane.f32.xlu0 %v580
    %v582 = vpop.xlane.xlu0 %581
    %v583 = vsel %vm168, %v162, 0.0
    %584 = vadd.xlane.f32.xlu0 %v583
    %v585 = vpop.xlane.xlu0 %584
    %v586 = vsel %vm168, %v163, 0.0
    %587 = vadd.xlane.f32.xlu0 %v586
    %v588 = vpop.xlane.xlu0 %587
    %v589 = vsel %vm168, %v164, 0.0
    %590 = vadd.xlane.f32.xlu0 %v589
    %v591 = vpop.xlane.xlu0 %590
    %v592 = vsel %vm168, %v165, 0.0
    %593 = vadd.xlane.f32.xlu0 %v592
    %v594 = vpop.xlane.xlu0 %593
    %v595 = vsel %vm168, %v166, 0.0
    %596 = vadd.xlane.f32.xlu0 %v595
    %v597 = vpop.xlane.xlu0 %596
    %v598 = vsel %vm168, %v167, 0.0
    %599 = vadd.xlane.f32.xlu0 %v598
    %v600 = vpop.xlane.xlu0 %599
    %v601 = vld [vmem:[%s1] sm:$0xff]
    %v602 = vld [vmem:[%s1 + $0x8] sm:$0xff]
    %v603 = vld [vmem:[%s1 + $0x10] sm:$0xff]
    %v604 = vld [vmem:[%s1 + $0x18] sm:$0xff]
    %v605 = vld [vmem:[%s1 + $0x20] sm:$0xff]
    %v606 = vld [vmem:[%s1 + $0x28] sm:$0xff]
    %v607 = vld [vmem:[%s1 + $0x30] sm:$0xff]
    %v608 = vld [vmem:[%s1 + $0x38] sm:$0xff]
    %v609 = vld [vmem:[%s1 + $0x40] sm:$0xff]
    %v610 = vld [vmem:[%s1 + $0x48] sm:$0xff]
    %v611 = vld [vmem:[%s1 + $0x50] sm:$0xff]
    %v612 = vld [vmem:[%s1 + $0x58] sm:$0xff]
    %v613 = vld [vmem:[%s1 + $0x60] sm:$0xff]
    %v614 = vld [vmem:[%s1 + $0x68] sm:$0xff]
    %v615 = vld [vmem:[%s1 + $0x70] sm:$0xff]
    %v616 = vld [vmem:[%s1 + $0x78] sm:$0xff]
    %v617 = vld [vmem:[%s1 + $0x80] sm:$0xff]
    %v618 = vld [vmem:[%s1 + $0x88] sm:$0xff]
    %v619 = vld [vmem:[%s1 + $0x90] sm:$0xff]
    %v620 = vld [vmem:[%s1 + $0x98] sm:$0xff]
    %v621 = vld [vmem:[%s1 + $0xa0] sm:$0xff]
    %v622 = vld [vmem:[%s1 + $0xa8] sm:$0xff]
    %v623 = vld [vmem:[%s1 + $0xb0] sm:$0xff]
    %v624 = vld [vmem:[%s1 + $0xb8] sm:$0xff]
    %v625 = vld [vmem:[%s1 + $0xc0] sm:$0xff]
    %v626 = vld [vmem:[%s1 + $0xc8] sm:$0xff]
    %v627 = vld [vmem:[%s1 + $0xd0] sm:$0xff]
    %v628 = vld [vmem:[%s1 + $0xd8] sm:$0xff]
    %v629 = vld [vmem:[%s1 + $0xe0] sm:$0xff]
    %v630 = vld [vmem:[%s1 + $0xe8] sm:$0xff]
    %v631 = vld [vmem:[%s1 + $0xf0] sm:$0xff]
    %v632 = vld [vmem:[%s1 + $0xf8] sm:$0xff]
    %v633 = vld [vmem:[%s1 + $0x100] sm:$0xff]
    %v634 = vld [vmem:[%s1 + $0x108] sm:$0xff]
    %v635 = vld [vmem:[%s1 + $0x110] sm:$0xff]
    %v636 = vld [vmem:[%s1 + $0x118] sm:$0xff]
    %v637 = vld [vmem:[%s1 + $0x120] sm:$0xff]
    %v638 = vld [vmem:[%s1 + $0x128] sm:$0xff]
    %v639 = vld [vmem:[%s1 + $0x130] sm:$0xff]
    %v640 = vld [vmem:[%s1 + $0x138] sm:$0xff]
    %v641 = vld [vmem:[%s1 + $0x140] sm:$0xff]
    %v642 = vld [vmem:[%s1 + $0x148] sm:$0xff]
    %v643 = vld [vmem:[%s1 + $0x150] sm:$0xff]
    %v644 = vld [vmem:[%s1 + $0x158] sm:$0xff]
    %v645 = vld [vmem:[%s1 + $0x160] sm:$0xff]
    %v646 = vld [vmem:[%s1 + $0x168] sm:$0xff]
    %v647 = vld [vmem:[%s1 + $0x170] sm:$0xff]
    %v648 = vld [vmem:[%s1 + $0x178] sm:$0xff]
    %v649 = vld [vmem:[%s1 + $0x180] sm:$0xff]
    %v650 = vld [vmem:[%s1 + $0x188] sm:$0xff]
    %v651 = vld [vmem:[%s1 + $0x190] sm:$0xff]
    %v652 = vld [vmem:[%s1 + $0x198] sm:$0xff]
    %v653 = vld [vmem:[%s1 + $0x1a0] sm:$0xff]
    %v654 = vld [vmem:[%s1 + $0x1a8] sm:$0xff]
    %v655 = vld [vmem:[%s1 + $0x1b0] sm:$0xff]
    %v656 = vld [vmem:[%s1 + $0x1b8] sm:$0xff]
    %v657 = vld [vmem:[%s1 + $0x1c0] sm:$0xff]
    %v658 = vld [vmem:[%s1 + $0x1c8] sm:$0xff]
    %v659 = vld [vmem:[%s1 + $0x1d0] sm:$0xff]
    %v660 = vld [vmem:[%s1 + $0x1d8] sm:$0xff]
    %v661 = vld [vmem:[%s1 + $0x1e0] sm:$0xff]
    %v662 = vld [vmem:[%s1 + $0x1e8] sm:$0xff]
    %v663 = vld [vmem:[%s1 + $0x1f0] sm:$0xff]
    %v664 = vld [vmem:[%s1 + $0x1f8] sm:$0xff]
    %v665 = vld [vmem:[%s1 + $0x200] sm:$0xff]
    %v666 = vld [vmem:[%s1 + $0x208] sm:$0xff]
    %v667 = vld [vmem:[%s1 + $0x210] sm:$0xff]
    %v668 = vld [vmem:[%s1 + $0x218] sm:$0xff]
    %v669 = vld [vmem:[%s1 + $0x220] sm:$0xff]
    %v670 = vld [vmem:[%s1 + $0x228] sm:$0xff]
    %v671 = vld [vmem:[%s1 + $0x230] sm:$0xff]
    %v672 = vld [vmem:[%s1 + $0x238] sm:$0xff]
    %v673 = vld [vmem:[%s1 + $0x240] sm:$0xff]
    %v674 = vld [vmem:[%s1 + $0x248] sm:$0xff]
    %v675 = vld [vmem:[%s1 + $0x250] sm:$0xff]
    %v676 = vld [vmem:[%s1 + $0x258] sm:$0xff]
    %v677 = vld [vmem:[%s1 + $0x260] sm:$0xff]
    %v678 = vld [vmem:[%s1 + $0x268] sm:$0xff]
    %v679 = vld [vmem:[%s1 + $0x270] sm:$0xff]
    %v680 = vld [vmem:[%s1 + $0x278] sm:$0xff]
    %v681 = vld [vmem:[%s1 + $0x280] sm:$0xff]
    %v682 = vld [vmem:[%s1 + $0x288] sm:$0xff]
    %v683 = vld [vmem:[%s1 + $0x290] sm:$0xff]
    %v684 = vld [vmem:[%s1 + $0x298] sm:$0xff]
    %v685 = vld [vmem:[%s1 + $0x2a0] sm:$0xff]
    %v686 = vld [vmem:[%s1 + $0x2a8] sm:$0xff]
    %v687 = vld [vmem:[%s1 + $0x2b0] sm:$0xff]
    %v688 = vld [vmem:[%s1 + $0x2b8] sm:$0xff]
    %v689 = vld [vmem:[%s1 + $0x2c0] sm:$0xff]
    %v690 = vld [vmem:[%s1 + $0x2c8] sm:$0xff]
    %v691 = vld [vmem:[%s1 + $0x2d0] sm:$0xff]
    %v692 = vld [vmem:[%s1 + $0x2d8] sm:$0xff]
    %v693 = vld [vmem:[%s1 + $0x2e0] sm:$0xff]
    %v694 = vld [vmem:[%s1 + $0x2e8] sm:$0xff]
    %v695 = vld [vmem:[%s1 + $0x2f0] sm:$0xff]
    %v696 = vld [vmem:[%s1 + $0x2f8] sm:$0xff]
    %v697 = vld [vmem:[%s1 + $0x300] sm:$0xff]
    %v698 = vld [vmem:[%s1 + $0x308] sm:$0xff]
    %v699 = vld [vmem:[%s1 + $0x310] sm:$0xff]
    %v700 = vld [vmem:[%s1 + $0x318] sm:$0xff]
    %v701 = vld [vmem:[%s1 + $0x320] sm:$0xff]
    %v702 = vld [vmem:[%s1 + $0x328] sm:$0xff]
    %v703 = vld [vmem:[%s1 + $0x330] sm:$0xff]
    %v704 = vld [vmem:[%s1 + $0x338] sm:$0xff]
    %v705 = vld [vmem:[%s1 + $0x340] sm:$0xff]
    %v706 = vld [vmem:[%s1 + $0x348] sm:$0xff]
    %v707 = vld [vmem:[%s1 + $0x350] sm:$0xff]
    %v708 = vld [vmem:[%s1 + $0x358] sm:$0xff]
    %v709 = vld [vmem:[%s1 + $0x360] sm:$0xff]
    %v710 = vld [vmem:[%s1 + $0x368] sm:$0xff]
    %v711 = vld [vmem:[%s1 + $0x370] sm:$0xff]
    %v712 = vld [vmem:[%s1 + $0x378] sm:$0xff]
    %v713 = vld [vmem:[%s1 + $0x380] sm:$0xff]
    %v714 = vld [vmem:[%s1 + $0x388] sm:$0xff]
    %v715 = vld [vmem:[%s1 + $0x390] sm:$0xff]
    %v716 = vld [vmem:[%s1 + $0x398] sm:$0xff]
    %v717 = vld [vmem:[%s1 + $0x3a0] sm:$0xff]
    %v718 = vld [vmem:[%s1 + $0x3a8] sm:$0xff]
    %v719 = vld [vmem:[%s1 + $0x3b0] sm:$0xff]
    %v720 = vld [vmem:[%s1 + $0x3b8] sm:$0xff]
    %v721 = vld [vmem:[%s1 + $0x3c0] sm:$0xff]
    %v722 = vld [vmem:[%s1 + $0x3c8] sm:$0xff]
    %v723 = vld [vmem:[%s1 + $0x3d0] sm:$0xff]
    %v724 = vld [vmem:[%s1 + $0x3d8] sm:$0xff]
    %v725 = vld [vmem:[%s1 + $0x3e0] sm:$0xff]
    %v726 = vld [vmem:[%s1 + $0x3e8] sm:$0xff]
    %v727 = vld [vmem:[%s1 + $0x3f0] sm:$0xff]
    %v728 = vld [vmem:[%s1 + $0x3f8] sm:$0xff]
    %v729 = vld [vmem:[%s1 + $0x400] sm:$0xff]
    %v730 = vld [vmem:[%s1 + $0x408] sm:$0xff]
    %v731 = vld [vmem:[%s1 + $0x410] sm:$0xff]
    %v732 = vld [vmem:[%s1 + $0x418] sm:$0xff]
    %v733 = vld [vmem:[%s1 + $0x420] sm:$0xff]
    %v734 = vld [vmem:[%s1 + $0x428] sm:$0xff]
    %v735 = vld [vmem:[%s1 + $0x430] sm:$0xff]
    %v736 = vld [vmem:[%s1 + $0x438] sm:$0xff]
    %v737 = vld [vmem:[%s1 + $0x440] sm:$0xff]
    %v738 = vld [vmem:[%s1 + $0x448] sm:$0xff]
    %v739 = vld [vmem:[%s1 + $0x450] sm:$0xff]
    %v740 = vld [vmem:[%s1 + $0x458] sm:$0xff]
    %v741 = vld [vmem:[%s1 + $0x460] sm:$0xff]
    %v742 = vld [vmem:[%s1 + $0x468] sm:$0xff]
    %v743 = vld [vmem:[%s1 + $0x470] sm:$0xff]
    %v744 = vld [vmem:[%s1 + $0x478] sm:$0xff]
    %v745 = vsel %vm168, %v601, 0.0
    %746 = vadd.xlane.f32.xlu0 %v745
    %v747 = vpop.xlane.xlu0 %746
    %v748 = vsel %vm168, %v602, 0.0
    %749 = vadd.xlane.f32.xlu0 %v748
    %v750 = vpop.xlane.xlu0 %749
    %v751 = vsel %vm168, %v603, 0.0
    %752 = vadd.xlane.f32.xlu0 %v751
    %v753 = vpop.xlane.xlu0 %752
    %v754 = vsel %vm168, %v604, 0.0
    %755 = vadd.xlane.f32.xlu0 %v754
    %v756 = vpop.xlane.xlu0 %755
    %v757 = vsel %vm168, %v605, 0.0
    %758 = vadd.xlane.f32.xlu0 %v757
    %v759 = vpop.xlane.xlu0 %758
    %v760 = vsel %vm168, %v606, 0.0
    %761 = vadd.xlane.f32.xlu0 %v760
    %v762 = vpop.xlane.xlu0 %761
    %v763 = vsel %vm168, %v607, 0.0
    %764 = vadd.xlane.f32.xlu0 %v763
    %v765 = vpop.xlane.xlu0 %764
    %v766 = vsel %vm168, %v608, 0.0
    %767 = vadd.xlane.f32.xlu0 %v766
    %v768 = vpop.xlane.xlu0 %767
    %v769 = vsel %vm168, %v609, 0.0
    %770 = vadd.xlane.f32.xlu0 %v769
    %v771 = vpop.xlane.xlu0 %770
    %v772 = vsel %vm168, %v610, 0.0
    %773 = vadd.xlane.f32.xlu0 %v772
    %v774 = vpop.xlane.xlu0 %773
    %v775 = vsel %vm168, %v611, 0.0
    %776 = vadd.xlane.f32.xlu0 %v775
    %v777 = vpop.xlane.xlu0 %776
    %v778 = vsel %vm168, %v612, 0.0
    %779 = vadd.xlane.f32.xlu0 %v778
    %v780 = vpop.xlane.xlu0 %779
    %v781 = vsel %vm168, %v613, 0.0
    %782 = vadd.xlane.f32.xlu0 %v781
    %v783 = vpop.xlane.xlu0 %782
    %v784 = vsel %vm168, %v614, 0.0
    %785 = vadd.xlane.f32.xlu0 %v784
    %v786 = vpop.xlane.xlu0 %785
    %v787 = vsel %vm168, %v615, 0.0
    %788 = vadd.xlane.f32.xlu0 %v787
    %v789 = vpop.xlane.xlu0 %788
    %v790 = vsel %vm168, %v616, 0.0
    %791 = vadd.xlane.f32.xlu0 %v790
    %v792 = vpop.xlane.xlu0 %791
    %v793 = vsel %vm168, %v617, 0.0
    %794 = vadd.xlane.f32.xlu0 %v793
    %v795 = vpop.xlane.xlu0 %794
    %v796 = vsel %vm168, %v618, 0.0
    %797 = vadd.xlane.f32.xlu0 %v796
    %v798 = vpop.xlane.xlu0 %797
    %v799 = vsel %vm168, %v619, 0.0
    %800 = vadd.xlane.f32.xlu0 %v799
    %v801 = vpop.xlane.xlu0 %800
    %v802 = vsel %vm168, %v620, 0.0
    %803 = vadd.xlane.f32.xlu0 %v802
    %v804 = vpop.xlane.xlu0 %803
    %v805 = vsel %vm168, %v621, 0.0
    %806 = vadd.xlane.f32.xlu0 %v805
    %v807 = vpop.xlane.xlu0 %806
    %v808 = vsel %vm168, %v622, 0.0
    %809 = vadd.xlane.f32.xlu0 %v808
    %v810 = vpop.xlane.xlu0 %809
    %v811 = vsel %vm168, %v623, 0.0
    %812 = vadd.xlane.f32.xlu0 %v811
    %v813 = vpop.xlane.xlu0 %812
    %v814 = vsel %vm168, %v624, 0.0
    %815 = vadd.xlane.f32.xlu0 %v814
    %v816 = vpop.xlane.xlu0 %815
    %v817 = vsel %vm168, %v625, 0.0
    %818 = vadd.xlane.f32.xlu0 %v817
    %v819 = vpop.xlane.xlu0 %818
    %v820 = vsel %vm168, %v626, 0.0
    %821 = vadd.xlane.f32.xlu0 %v820
    %v822 = vpop.xlane.xlu0 %821
    %v823 = vsel %vm168, %v627, 0.0
    %824 = vadd.xlane.f32.xlu0 %v823
    %v825 = vpop.xlane.xlu0 %824
    %v826 = vsel %vm168, %v628, 0.0
    %827 = vadd.xlane.f32.xlu0 %v826
    %v828 = vpop.xlane.xlu0 %827
    %v829 = vsel %vm168, %v629, 0.0
    %830 = vadd.xlane.f32.xlu0 %v829
    %v831 = vpop.xlane.xlu0 %830
    %v832 = vsel %vm168, %v630, 0.0
    %833 = vadd.xlane.f32.xlu0 %v832
    %v834 = vpop.xlane.xlu0 %833
    %v835 = vsel %vm168, %v631, 0.0
    %836 = vadd.xlane.f32.xlu0 %v835
    %v837 = vpop.xlane.xlu0 %836
    %v838 = vsel %vm168, %v632, 0.0
    %839 = vadd.xlane.f32.xlu0 %v838
    %v840 = vpop.xlane.xlu0 %839
    %v841 = vsel %vm168, %v633, 0.0
    %842 = vadd.xlane.f32.xlu0 %v841
    %v843 = vpop.xlane.xlu0 %842
    %v844 = vsel %vm168, %v634, 0.0
    %845 = vadd.xlane.f32.xlu0 %v844
    %v846 = vpop.xlane.xlu0 %845
    %v847 = vsel %vm168, %v635, 0.0
    %848 = vadd.xlane.f32.xlu0 %v847
    %v849 = vpop.xlane.xlu0 %848
    %v850 = vsel %vm168, %v636, 0.0
    %851 = vadd.xlane.f32.xlu0 %v850
    %v852 = vpop.xlane.xlu0 %851
    %v853 = vsel %vm168, %v637, 0.0
    %854 = vadd.xlane.f32.xlu0 %v853
    %v855 = vpop.xlane.xlu0 %854
    %v856 = vsel %vm168, %v638, 0.0
    %857 = vadd.xlane.f32.xlu0 %v856
    %v858 = vpop.xlane.xlu0 %857
    %v859 = vsel %vm168, %v639, 0.0
    %860 = vadd.xlane.f32.xlu0 %v859
    %v861 = vpop.xlane.xlu0 %860
    %v862 = vsel %vm168, %v640, 0.0
    %863 = vadd.xlane.f32.xlu0 %v862
    %v864 = vpop.xlane.xlu0 %863
    %v865 = vsel %vm168, %v641, 0.0
    %866 = vadd.xlane.f32.xlu0 %v865
    %v867 = vpop.xlane.xlu0 %866
    %v868 = vsel %vm168, %v642, 0.0
    %869 = vadd.xlane.f32.xlu0 %v868
    %v870 = vpop.xlane.xlu0 %869
    %v871 = vsel %vm168, %v643, 0.0
    %872 = vadd.xlane.f32.xlu0 %v871
    %v873 = vpop.xlane.xlu0 %872
    %v874 = vsel %vm168, %v644, 0.0
    %875 = vadd.xlane.f32.xlu0 %v874
    %v876 = vpop.xlane.xlu0 %875
    %v877 = vsel %vm168, %v645, 0.0
    %878 = vadd.xlane.f32.xlu0 %v877
    %v879 = vpop.xlane.xlu0 %878
    %v880 = vsel %vm168, %v646, 0.0
    %881 = vadd.xlane.f32.xlu0 %v880
    %v882 = vpop.xlane.xlu0 %881
    %v883 = vsel %vm168, %v647, 0.0
    %884 = vadd.xlane.f32.xlu0 %v883
    %v885 = vpop.xlane.xlu0 %884
    %v886 = vsel %vm168, %v648, 0.0
    %887 = vadd.xlane.f32.xlu0 %v886
    %v888 = vpop.xlane.xlu0 %887
    %v889 = vsel %vm168, %v649, 0.0
    %890 = vadd.xlane.f32.xlu0 %v889
    %v891 = vpop.xlane.xlu0 %890
    %v892 = vsel %vm168, %v650, 0.0
    %893 = vadd.xlane.f32.xlu0 %v892
    %v894 = vpop.xlane.xlu0 %893
    %v895 = vsel %vm168, %v651, 0.0
    %896 = vadd.xlane.f32.xlu0 %v895
    %v897 = vpop.xlane.xlu0 %896
    %v898 = vsel %vm168, %v652, 0.0
    %899 = vadd.xlane.f32.xlu0 %v898
    %v900 = vpop.xlane.xlu0 %899
    %v901 = vsel %vm168, %v653, 0.0
    %902 = vadd.xlane.f32.xlu0 %v901
    %v903 = vpop.xlane.xlu0 %902
    %v904 = vsel %vm168, %v654, 0.0
    %905 = vadd.xlane.f32.xlu0 %v904
    %v906 = vpop.xlane.xlu0 %905
    %v907 = vsel %vm168, %v655, 0.0
    %908 = vadd.xlane.f32.xlu0 %v907
    %v909 = vpop.xlane.xlu0 %908
    %v910 = vsel %vm168, %v656, 0.0
    %911 = vadd.xlane.f32.xlu0 %v910
    %v912 = vpop.xlane.xlu0 %911
    %v913 = vsel %vm168, %v657, 0.0
    %914 = vadd.xlane.f32.xlu0 %v913
    %v915 = vpop.xlane.xlu0 %914
    %v916 = vsel %vm168, %v658, 0.0
    %917 = vadd.xlane.f32.xlu0 %v916
    %v918 = vpop.xlane.xlu0 %917
    %v919 = vsel %vm168, %v659, 0.0
    %920 = vadd.xlane.f32.xlu0 %v919
    %v921 = vpop.xlane.xlu0 %920
    %v922 = vsel %vm168, %v660, 0.0
    %923 = vadd.xlane.f32.xlu0 %v922
    %v924 = vpop.xlane.xlu0 %923
    %v925 = vsel %vm168, %v661, 0.0
    %926 = vadd.xlane.f32.xlu0 %v925
    %v927 = vpop.xlane.xlu0 %926
    %v928 = vsel %vm168, %v662, 0.0
    %929 = vadd.xlane.f32.xlu0 %v928
    %v930 = vpop.xlane.xlu0 %929
    %v931 = vsel %vm168, %v663, 0.0
    %932 = vadd.xlane.f32.xlu0 %v931
    %v933 = vpop.xlane.xlu0 %932
    %v934 = vsel %vm168, %v664, 0.0
    %935 = vadd.xlane.f32.xlu0 %v934
    %v936 = vpop.xlane.xlu0 %935
    %v937 = vsel %vm168, %v665, 0.0
    %938 = vadd.xlane.f32.xlu0 %v937
    %v939 = vpop.xlane.xlu0 %938
    %v940 = vsel %vm168, %v666, 0.0
    %941 = vadd.xlane.f32.xlu0 %v940
    %v942 = vpop.xlane.xlu0 %941
    %v943 = vsel %vm168, %v667, 0.0
    %944 = vadd.xlane.f32.xlu0 %v943
    %v945 = vpop.xlane.xlu0 %944
    %v946 = vsel %vm168, %v668, 0.0
    %947 = vadd.xlane.f32.xlu0 %v946
    %v948 = vpop.xlane.xlu0 %947
    %v949 = vsel %vm168, %v669, 0.0
    %950 = vadd.xlane.f32.xlu0 %v949
    %v951 = vpop.xlane.xlu0 %950
    %v952 = vsel %vm168, %v670, 0.0
    %953 = vadd.xlane.f32.xlu0 %v952
    %v954 = vpop.xlane.xlu0 %953
    %v955 = vsel %vm168, %v671, 0.0
    %956 = vadd.xlane.f32.xlu0 %v955
    %v957 = vpop.xlane.xlu0 %956
    %v958 = vsel %vm168, %v672, 0.0
    %959 = vadd.xlane.f32.xlu0 %v958
    %v960 = vpop.xlane.xlu0 %959
    %v961 = vsel %vm168, %v673, 0.0
    %962 = vadd.xlane.f32.xlu0 %v961
    %v963 = vpop.xlane.xlu0 %962
    %v964 = vsel %vm168, %v674, 0.0
    %965 = vadd.xlane.f32.xlu0 %v964
    %v966 = vpop.xlane.xlu0 %965
    %v967 = vsel %vm168, %v675, 0.0
    %968 = vadd.xlane.f32.xlu0 %v967
    %v969 = vpop.xlane.xlu0 %968
    %v970 = vsel %vm168, %v676, 0.0
    %971 = vadd.xlane.f32.xlu0 %v970
    %v972 = vpop.xlane.xlu0 %971
    %v973 = vsel %vm168, %v677, 0.0
    %974 = vadd.xlane.f32.xlu0 %v973
    %v975 = vpop.xlane.xlu0 %974
    %v976 = vsel %vm168, %v678, 0.0
    %977 = vadd.xlane.f32.xlu0 %v976
    %v978 = vpop.xlane.xlu0 %977
    %v979 = vsel %vm168, %v679, 0.0
    %980 = vadd.xlane.f32.xlu0 %v979
    %v981 = vpop.xlane.xlu0 %980
    %v982 = vsel %vm168, %v680, 0.0
    %983 = vadd.xlane.f32.xlu0 %v982
    %v984 = vpop.xlane.xlu0 %983
    %v985 = vsel %vm168, %v681, 0.0
    %986 = vadd.xlane.f32.xlu0 %v985
    %v987 = vpop.xlane.xlu0 %986
    %v988 = vsel %vm168, %v682, 0.0
    %989 = vadd.xlane.f32.xlu0 %v988
    %v990 = vpop.xlane.xlu0 %989
    %v991 = vsel %vm168, %v683, 0.0
    %992 = vadd.xlane.f32.xlu0 %v991
    %v993 = vpop.xlane.xlu0 %992
    %v994 = vsel %vm168, %v684, 0.0
    %995 = vadd.xlane.f32.xlu0 %v994
    %v996 = vpop.xlane.xlu0 %995
    %v997 = vsel %vm168, %v685, 0.0
    %998 = vadd.xlane.f32.xlu0 %v997
    %v999 = vpop.xlane.xlu0 %998
    %v1000 = vsel %vm168, %v686, 0.0
    %1001 = vadd.xlane.f32.xlu0 %v1000
    %v1002 = vpop.xlane.xlu0 %1001
    %v1003 = vsel %vm168, %v687, 0.0
    %1004 = vadd.xlane.f32.xlu0 %v1003
    %v1005 = vpop.xlane.xlu0 %1004
    %v1006 = vsel %vm168, %v688, 0.0
    %1007 = vadd.xlane.f32.xlu0 %v1006
    %v1008 = vpop.xlane.xlu0 %1007
    %v1009 = vsel %vm168, %v689, 0.0
    %1010 = vadd.xlane.f32.xlu0 %v1009
    %v1011 = vpop.xlane.xlu0 %1010
    %v1012 = vsel %vm168, %v690, 0.0
    %1013 = vadd.xlane.f32.xlu0 %v1012
    %v1014 = vpop.xlane.xlu0 %1013
    %v1015 = vsel %vm168, %v691, 0.0
    %1016 = vadd.xlane.f32.xlu0 %v1015
    %v1017 = vpop.xlane.xlu0 %1016
    %v1018 = vsel %vm168, %v692, 0.0
    %1019 = vadd.xlane.f32.xlu0 %v1018
    %v1020 = vpop.xlane.xlu0 %1019
    %v1021 = vsel %vm168, %v693, 0.0
    %1022 = vadd.xlane.f32.xlu0 %v1021
    %v1023 = vpop.xlane.xlu0 %1022
    %v1024 = vsel %vm168, %v694, 0.0
    %1025 = vadd.xlane.f32.xlu0 %v1024
    %v1026 = vpop.xlane.xlu0 %1025
    %v1027 = vsel %vm168, %v695, 0.0
    %1028 = vadd.xlane.f32.xlu0 %v1027
    %v1029 = vpop.xlane.xlu0 %1028
    %v1030 = vsel %vm168, %v696, 0.0
    %1031 = vadd.xlane.f32.xlu0 %v1030
    %v1032 = vpop.xlane.xlu0 %1031
    %v1033 = vsel %vm168, %v697, 0.0
    %1034 = vadd.xlane.f32.xlu0 %v1033
    %v1035 = vpop.xlane.xlu0 %1034
    %v1036 = vsel %vm168, %v698, 0.0
    %1037 = vadd.xlane.f32.xlu0 %v1036
    %v1038 = vpop.xlane.xlu0 %1037
    %v1039 = vsel %vm168, %v699, 0.0
    %1040 = vadd.xlane.f32.xlu0 %v1039
    %v1041 = vpop.xlane.xlu0 %1040
    %v1042 = vsel %vm168, %v700, 0.0
    %1043 = vadd.xlane.f32.xlu0 %v1042
    %v1044 = vpop.xlane.xlu0 %1043
    %v1045 = vsel %vm168, %v701, 0.0
    %1046 = vadd.xlane.f32.xlu0 %v1045
    %v1047 = vpop.xlane.xlu0 %1046
    %v1048 = vsel %vm168, %v702, 0.0
    %1049 = vadd.xlane.f32.xlu0 %v1048
    %v1050 = vpop.xlane.xlu0 %1049
    %v1051 = vsel %vm168, %v703, 0.0
    %1052 = vadd.xlane.f32.xlu0 %v1051
    %v1053 = vpop.xlane.xlu0 %1052
    %v1054 = vsel %vm168, %v704, 0.0
    %1055 = vadd.xlane.f32.xlu0 %v1054
    %v1056 = vpop.xlane.xlu0 %1055
    %v1057 = vsel %vm168, %v705, 0.0
    %1058 = vadd.xlane.f32.xlu0 %v1057
    %v1059 = vpop.xlane.xlu0 %1058
    %v1060 = vsel %vm168, %v706, 0.0
    %1061 = vadd.xlane.f32.xlu0 %v1060
    %v1062 = vpop.xlane.xlu0 %1061
    %v1063 = vsel %vm168, %v707, 0.0
    %1064 = vadd.xlane.f32.xlu0 %v1063
    %v1065 = vpop.xlane.xlu0 %1064
    %v1066 = vsel %vm168, %v708, 0.0
    %1067 = vadd.xlane.f32.xlu0 %v1066
    %v1068 = vpop.xlane.xlu0 %1067
    %v1069 = vsel %vm168, %v709, 0.0
    %1070 = vadd.xlane.f32.xlu0 %v1069
    %v1071 = vpop.xlane.xlu0 %1070
    %v1072 = vsel %vm168, %v710, 0.0
    %1073 = vadd.xlane.f32.xlu0 %v1072
    %v1074 = vpop.xlane.xlu0 %1073
    %v1075 = vsel %vm168, %v711, 0.0
    %1076 = vadd.xlane.f32.xlu0 %v1075
    %v1077 = vpop.xlane.xlu0 %1076
    %v1078 = vsel %vm168, %v712, 0.0
    %1079 = vadd.xlane.f32.xlu0 %v1078
    %v1080 = vpop.xlane.xlu0 %1079
    %v1081 = vsel %vm168, %v713, 0.0
    %1082 = vadd.xlane.f32.xlu0 %v1081
    %v1083 = vpop.xlane.xlu0 %1082
    %v1084 = vsel %vm168, %v714, 0.0
    %1085 = vadd.xlane.f32.xlu0 %v1084
    %v1086 = vpop.xlane.xlu0 %1085
    %v1087 = vsel %vm168, %v715, 0.0
    %1088 = vadd.xlane.f32.xlu0 %v1087
    %v1089 = vpop.xlane.xlu0 %1088
    %v1090 = vsel %vm168, %v716, 0.0
    %1091 = vadd.xlane.f32.xlu0 %v1090
    %v1092 = vpop.xlane.xlu0 %1091
    %v1093 = vsel %vm168, %v717, 0.0
    %1094 = vadd.xlane.f32.xlu0 %v1093
    %v1095 = vpop.xlane.xlu0 %1094
    %v1096 = vsel %vm168, %v718, 0.0
    %1097 = vadd.xlane.f32.xlu0 %v1096
    %v1098 = vpop.xlane.xlu0 %1097
    %v1099 = vsel %vm168, %v719, 0.0
    %1100 = vadd.xlane.f32.xlu0 %v1099
    %v1101 = vpop.xlane.xlu0 %1100
    %v1102 = vsel %vm168, %v720, 0.0
    %1103 = vadd.xlane.f32.xlu0 %v1102
    %v1104 = vpop.xlane.xlu0 %1103
    %v1105 = vsel %vm168, %v721, 0.0
    %1106 = vadd.xlane.f32.xlu0 %v1105
    %v1107 = vpop.xlane.xlu0 %1106
    %v1108 = vsel %vm168, %v722, 0.0
    %1109 = vadd.xlane.f32.xlu0 %v1108
    %v1110 = vpop.xlane.xlu0 %1109
    %v1111 = vsel %vm168, %v723, 0.0
    %1112 = vadd.xlane.f32.xlu0 %v1111
    %v1113 = vpop.xlane.xlu0 %1112
    %v1114 = vsel %vm168, %v724, 0.0
    %1115 = vadd.xlane.f32.xlu0 %v1114
    %v1116 = vpop.xlane.xlu0 %1115
    %v1117 = vsel %vm168, %v725, 0.0
    %1118 = vadd.xlane.f32.xlu0 %v1117
    %v1119 = vpop.xlane.xlu0 %1118
    %v1120 = vsel %vm168, %v726, 0.0
    %1121 = vadd.xlane.f32.xlu0 %v1120
    %v1122 = vpop.xlane.xlu0 %1121
    %v1123 = vsel %vm168, %v727, 0.0
    %1124 = vadd.xlane.f32.xlu0 %v1123
    %v1125 = vpop.xlane.xlu0 %1124
    %v1126 = vsel %vm168, %v728, 0.0
    %1127 = vadd.xlane.f32.xlu0 %v1126
    %v1128 = vpop.xlane.xlu0 %1127
    %v1129 = vsel %vm168, %v729, 0.0
    %1130 = vadd.xlane.f32.xlu0 %v1129
    %v1131 = vpop.xlane.xlu0 %1130
    %v1132 = vsel %vm168, %v730, 0.0
    %1133 = vadd.xlane.f32.xlu0 %v1132
    %v1134 = vpop.xlane.xlu0 %1133
    %v1135 = vsel %vm168, %v731, 0.0
    %1136 = vadd.xlane.f32.xlu0 %v1135
    %v1137 = vpop.xlane.xlu0 %1136
    %v1138 = vsel %vm168, %v732, 0.0
    %1139 = vadd.xlane.f32.xlu0 %v1138
    %v1140 = vpop.xlane.xlu0 %1139
    %v1141 = vsel %vm168, %v733, 0.0
    %1142 = vadd.xlane.f32.xlu0 %v1141
    %v1143 = vpop.xlane.xlu0 %1142
    %v1144 = vsel %vm168, %v734, 0.0
    %1145 = vadd.xlane.f32.xlu0 %v1144
    %v1146 = vpop.xlane.xlu0 %1145
    %v1147 = vsel %vm168, %v735, 0.0
    %1148 = vadd.xlane.f32.xlu0 %v1147
    %v1149 = vpop.xlane.xlu0 %1148
    %v1150 = vsel %vm168, %v736, 0.0
    %1151 = vadd.xlane.f32.xlu0 %v1150
    %v1152 = vpop.xlane.xlu0 %1151
    %v1153 = vsel %vm168, %v737, 0.0
    %1154 = vadd.xlane.f32.xlu0 %v1153
    %v1155 = vpop.xlane.xlu0 %1154
    %v1156 = vsel %vm168, %v738, 0.0
    %1157 = vadd.xlane.f32.xlu0 %v1156
    %v1158 = vpop.xlane.xlu0 %1157
    %v1159 = vsel %vm168, %v739, 0.0
    %1160 = vadd.xlane.f32.xlu0 %v1159
    %v1161 = vpop.xlane.xlu0 %1160
    %v1162 = vsel %vm168, %v740, 0.0
    %1163 = vadd.xlane.f32.xlu0 %v1162
    %v1164 = vpop.xlane.xlu0 %1163
    %v1165 = vsel %vm168, %v741, 0.0
    %1166 = vadd.xlane.f32.xlu0 %v1165
    %v1167 = vpop.xlane.xlu0 %1166
    %v1168 = vsel %vm168, %v742, 0.0
    %1169 = vadd.xlane.f32.xlu0 %v1168
    %v1170 = vpop.xlane.xlu0 %1169
    %v1171 = vsel %vm168, %v743, 0.0
    %1172 = vadd.xlane.f32.xlu0 %v1171
    %v1173 = vpop.xlane.xlu0 %1172
    %v1174 = vsel %vm168, %v744, 0.0
    %1175 = vadd.xlane.f32.xlu0 %v1174
    %v1176 = vpop.xlane.xlu0 %1175
    %v1177 = vadd.f32 %v171, %v747
    %v1178 = vadd.f32 %v174, %v750
    %v1179 = vadd.f32 %v177, %v753
    %v1180 = vadd.f32 %v180, %v756
    %v1181 = vadd.f32 %v183, %v759
    %v1182 = vadd.f32 %v186, %v762
    %v1183 = vadd.f32 %v189, %v765
    %v1184 = vadd.f32 %v192, %v768
    %v1185 = vadd.f32 %v195, %v771
    %v1186 = vadd.f32 %v198, %v774
    %v1187 = vadd.f32 %v201, %v777
    %v1188 = vadd.f32 %v204, %v780
    %v1189 = vadd.f32 %v207, %v783
    %v1190 = vadd.f32 %v210, %v786
    %v1191 = vadd.f32 %v213, %v789
    %v1192 = vadd.f32 %v216, %v792
    %v1193 = vadd.f32 %v219, %v795
    %v1194 = vadd.f32 %v222, %v798
    %v1195 = vadd.f32 %v225, %v801
    %v1196 = vadd.f32 %v228, %v804
    %v1197 = vadd.f32 %v231, %v807
    %v1198 = vadd.f32 %v234, %v810
    %v1199 = vadd.f32 %v237, %v813
    %v1200 = vadd.f32 %v240, %v816
    %v1201 = vadd.f32 %v243, %v819
    %v1202 = vadd.f32 %v246, %v822
    %v1203 = vadd.f32 %v249, %v825
    %v1204 = vadd.f32 %v252, %v828
    %v1205 = vadd.f32 %v255, %v831
    %v1206 = vadd.f32 %v258, %v834
    %v1207 = vadd.f32 %v261, %v837
    %v1208 = vadd.f32 %v264, %v840
    %v1209 = vadd.f32 %v267, %v843
    %v1210 = vadd.f32 %v270, %v846
    %v1211 = vadd.f32 %v273, %v849
    %v1212 = vadd.f32 %v276, %v852
    %v1213 = vadd.f32 %v279, %v855
    %v1214 = vadd.f32 %v282, %v858
    %v1215 = vadd.f32 %v285, %v861
    %v1216 = vadd.f32 %v288, %v864
    %v1217 = vadd.f32 %v291, %v867
    %v1218 = vadd.f32 %v294, %v870
    %v1219 = vadd.f32 %v297, %v873
    %v1220 = vadd.f32 %v300, %v876
    %v1221 = vadd.f32 %v303, %v879
    %v1222 = vadd.f32 %v306, %v882
    %v1223 = vadd.f32 %v309, %v885
    %v1224 = vadd.f32 %v312, %v888
    %v1225 = vadd.f32 %v315, %v891
    %v1226 = vadd.f32 %v318, %v894
    %v1227 = vadd.f32 %v321, %v897
    %v1228 = vadd.f32 %v324, %v900
    %v1229 = vadd.f32 %v327, %v903
    %v1230 = vadd.f32 %v330, %v906
    %v1231 = vadd.f32 %v333, %v909
    %v1232 = vadd.f32 %v336, %v912
    %v1233 = vadd.f32 %v339, %v915
    %v1234 = vadd.f32 %v342, %v918
    %v1235 = vadd.f32 %v345, %v921
    %v1236 = vadd.f32 %v348, %v924
    %v1237 = vadd.f32 %v351, %v927
    %v1238 = vadd.f32 %v354, %v930
    %v1239 = vadd.f32 %v357, %v933
    %v1240 = vadd.f32 %v360, %v936
    %v1241 = vadd.f32 %v363, %v939
    %v1242 = vadd.f32 %v366, %v942
    %v1243 = vadd.f32 %v369, %v945
    %v1244 = vadd.f32 %v372, %v948
    %v1245 = vadd.f32 %v375, %v951
    %v1246 = vadd.f32 %v378, %v954
    %v1247 = vadd.f32 %v381, %v957
    %v1248 = vadd.f32 %v384, %v960
    %v1249 = vadd.f32 %v387, %v963
    %v1250 = vadd.f32 %v390, %v966
    %v1251 = vadd.f32 %v393, %v969
    %v1252 = vadd.f32 %v396, %v972
    %v1253 = vadd.f32 %v399, %v975
    %v1254 = vadd.f32 %v402, %v978
    %v1255 = vadd.f32 %v405, %v981
    %v1256 = vadd.f32 %v408, %v984
    %v1257 = vadd.f32 %v411, %v987
    %v1258 = vadd.f32 %v414, %v990
    %v1259 = vadd.f32 %v417, %v993
    %v1260 = vadd.f32 %v420, %v996
    %v1261 = vadd.f32 %v423, %v999
    %v1262 = vadd.f32 %v426, %v1002
    %v1263 = vadd.f32 %v429, %v1005
    %v1264 = vadd.f32 %v432, %v1008
    %v1265 = vadd.f32 %v435, %v1011
    %v1266 = vadd.f32 %v438, %v1014
    %v1267 = vadd.f32 %v441, %v1017
    %v1268 = vadd.f32 %v444, %v1020
    %v1269 = vadd.f32 %v447, %v1023
    %v1270 = vadd.f32 %v450, %v1026
    %v1271 = vadd.f32 %v453, %v1029
    %v1272 = vadd.f32 %v456, %v1032
    %v1273 = vadd.f32 %v459, %v1035
    %v1274 = vadd.f32 %v462, %v1038
    %v1275 = vadd.f32 %v465, %v1041
    %v1276 = vadd.f32 %v468, %v1044
    %v1277 = vadd.f32 %v471, %v1047
    %v1278 = vadd.f32 %v474, %v1050
    %v1279 = vadd.f32 %v477, %v1053
    %v1280 = vadd.f32 %v480, %v1056
    %v1281 = vadd.f32 %v483, %v1059
    %v1282 = vadd.f32 %v486, %v1062
    %v1283 = vadd.f32 %v489, %v1065
    %v1284 = vadd.f32 %v492, %v1068
    %v1285 = vadd.f32 %v495, %v1071
    %v1286 = vadd.f32 %v498, %v1074
    %v1287 = vadd.f32 %v501, %v1077
    %v1288 = vadd.f32 %v504, %v1080
    %v1289 = vadd.f32 %v507, %v1083
    %v1290 = vadd.f32 %v510, %v1086
    %v1291 = vadd.f32 %v513, %v1089
    %v1292 = vadd.f32 %v516, %v1092
    %v1293 = vadd.f32 %v519, %v1095
    %v1294 = vadd.f32 %v522, %v1098
    %v1295 = vadd.f32 %v525, %v1101
    %v1296 = vadd.f32 %v528, %v1104
    %v1297 = vadd.f32 %v531, %v1107
    %v1298 = vadd.f32 %v534, %v1110
    %v1299 = vadd.f32 %v537, %v1113
    %v1300 = vadd.f32 %v540, %v1116
    %v1301 = vadd.f32 %v543, %v1119
    %v1302 = vadd.f32 %v546, %v1122
    %v1303 = vadd.f32 %v549, %v1125
    %v1304 = vadd.f32 %v552, %v1128
    %v1305 = vadd.f32 %v555, %v1131
    %v1306 = vadd.f32 %v558, %v1134
    %v1307 = vadd.f32 %v561, %v1137
    %v1308 = vadd.f32 %v564, %v1140
    %v1309 = vadd.f32 %v567, %v1143
    %v1310 = vadd.f32 %v570, %v1146
    %v1311 = vadd.f32 %v573, %v1149
    %v1312 = vadd.f32 %v576, %v1152
    %v1313 = vadd.f32 %v579, %v1155
    %v1314 = vadd.f32 %v582, %v1158
    %v1315 = vadd.f32 %v585, %v1161
    %v1316 = vadd.f32 %v588, %v1164
    %v1317 = vadd.f32 %v591, %v1167
    %v1318 = vadd.f32 %v594, %v1170
    %v1319 = vadd.f32 %v597, %v1173
    %v1320 = vadd.f32 %v600, %v1176
    %v1321 = vmul.f32 %v1177, 0.03125
    %v1322 = vmul.f32 %v1178, 0.03125
    %v1323 = vmul.f32 %v1179, 0.03125
    %v1324 = vmul.f32 %v1180, 0.03125
    %v1325 = vmul.f32 %v1181, 0.03125
    %v1326 = vmul.f32 %v1182, 0.03125
    %v1327 = vmul.f32 %v1183, 0.03125
    %v1328 = vmul.f32 %v1184, 0.03125
    %v1329 = vmul.f32 %v1185, 0.03125
    %v1330 = vmul.f32 %v1186, 0.03125
    %v1331 = vmul.f32 %v1187, 0.03125
    %v1332 = vmul.f32 %v1188, 0.03125
    %v1333 = vmul.f32 %v1189, 0.03125
    %v1334 = vmul.f32 %v1190, 0.03125
    %v1335 = vmul.f32 %v1191, 0.03125
    %v1336 = vmul.f32 %v1192, 0.03125
    %v1337 = vmul.f32 %v1193, 0.03125
    %v1338 = vmul.f32 %v1194, 0.03125
    %v1339 = vmul.f32 %v1195, 0.03125
    %v1340 = vmul.f32 %v1196, 0.03125
    %v1341 = vmul.f32 %v1197, 0.03125
    %v1342 = vmul.f32 %v1198, 0.03125
    %v1343 = vmul.f32 %v1199, 0.03125
    %v1344 = vmul.f32 %v1200, 0.03125
    %v1345 = vmul.f32 %v1201, 0.03125
    %v1346 = vmul.f32 %v1202, 0.03125
    %v1347 = vmul.f32 %v1203, 0.03125
    %v1348 = vmul.f32 %v1204, 0.03125
    %v1349 = vmul.f32 %v1205, 0.03125
    %v1350 = vmul.f32 %v1206, 0.03125
    %v1351 = vmul.f32 %v1207, 0.03125
    %v1352 = vmul.f32 %v1208, 0.03125
    %v1353 = vmul.f32 %v1209, 0.03125
    %v1354 = vmul.f32 %v1210, 0.03125
    %v1355 = vmul.f32 %v1211, 0.03125
    %v1356 = vmul.f32 %v1212, 0.03125
    %v1357 = vmul.f32 %v1213, 0.03125
    %v1358 = vmul.f32 %v1214, 0.03125
    %v1359 = vmul.f32 %v1215, 0.03125
    %v1360 = vmul.f32 %v1216, 0.03125
    %v1361 = vmul.f32 %v1217, 0.03125
    %v1362 = vmul.f32 %v1218, 0.03125
    %v1363 = vmul.f32 %v1219, 0.03125
    %v1364 = vmul.f32 %v1220, 0.03125
    %v1365 = vmul.f32 %v1221, 0.03125
    %v1366 = vmul.f32 %v1222, 0.03125
    %v1367 = vmul.f32 %v1223, 0.03125
    %v1368 = vmul.f32 %v1224, 0.03125
    %v1369 = vmul.f32 %v1225, 0.03125
    %v1370 = vmul.f32 %v1226, 0.03125
    %v1371 = vmul.f32 %v1227, 0.03125
    %v1372 = vmul.f32 %v1228, 0.03125
    %v1373 = vmul.f32 %v1229, 0.03125
    %v1374 = vmul.f32 %v1230, 0.03125
    %v1375 = vmul.f32 %v1231, 0.03125
    %v1376 = vmul.f32 %v1232, 0.03125
    %v1377 = vmul.f32 %v1233, 0.03125
    %v1378 = vmul.f32 %v1234, 0.03125
    %v1379 = vmul.f32 %v1235, 0.03125
    %v1380 = vmul.f32 %v1236, 0.03125
    %v1381 = vmul.f32 %v1237, 0.03125
    %v1382 = vmul.f32 %v1238, 0.03125
    %v1383 = vmul.f32 %v1239, 0.03125
    %v1384 = vmul.f32 %v1240, 0.03125
    %v1385 = vmul.f32 %v1241, 0.03125
    %v1386 = vmul.f32 %v1242, 0.03125
    %v1387 = vmul.f32 %v1243, 0.03125
    %v1388 = vmul.f32 %v1244, 0.03125
    %v1389 = vmul.f32 %v1245, 0.03125
    %v1390 = vmul.f32 %v1246, 0.03125
    %v1391 = vmul.f32 %v1247, 0.03125
    %v1392 = vmul.f32 %v1248, 0.03125
    %v1393 = vmul.f32 %v1249, 0.03125
    %v1394 = vmul.f32 %v1250, 0.03125
    %v1395 = vmul.f32 %v1251, 0.03125
    %v1396 = vmul.f32 %v1252, 0.03125
    %v1397 = vmul.f32 %v1253, 0.03125
    %v1398 = vmul.f32 %v1254, 0.03125
    %v1399 = vmul.f32 %v1255, 0.03125
    %v1400 = vmul.f32 %v1256, 0.03125
    %v1401 = vmul.f32 %v1257, 0.03125
    %v1402 = vmul.f32 %v1258, 0.03125
    %v1403 = vmul.f32 %v1259, 0.03125
    %v1404 = vmul.f32 %v1260, 0.03125
    %v1405 = vmul.f32 %v1261, 0.03125
    %v1406 = vmul.f32 %v1262, 0.03125
    %v1407 = vmul.f32 %v1263, 0.03125
    %v1408 = vmul.f32 %v1264, 0.03125
    %v1409 = vmul.f32 %v1265, 0.03125
    %v1410 = vmul.f32 %v1266, 0.03125
    %v1411 = vmul.f32 %v1267, 0.03125
    %v1412 = vmul.f32 %v1268, 0.03125
    %v1413 = vmul.f32 %v1269, 0.03125
    %v1414 = vmul.f32 %v1270, 0.03125
    %v1415 = vmul.f32 %v1271, 0.03125
    %v1416 = vmul.f32 %v1272, 0.03125
    %v1417 = vmul.f32 %v1273, 0.03125
    %v1418 = vmul.f32 %v1274, 0.03125
    %v1419 = vmul.f32 %v1275, 0.03125
    %v1420 = vmul.f32 %v1276, 0.03125
    %v1421 = vmul.f32 %v1277, 0.03125
    %v1422 = vmul.f32 %v1278, 0.03125
    %v1423 = vmul.f32 %v1279, 0.03125
    %v1424 = vmul.f32 %v1280, 0.03125
    %v1425 = vmul.f32 %v1281, 0.03125
    %v1426 = vmul.f32 %v1282, 0.03125
    %v1427 = vmul.f32 %v1283, 0.03125
    %v1428 = vmul.f32 %v1284, 0.03125
    %v1429 = vmul.f32 %v1285, 0.03125
    %v1430 = vmul.f32 %v1286, 0.03125
    %v1431 = vmul.f32 %v1287, 0.03125
    %v1432 = vmul.f32 %v1288, 0.03125
    %v1433 = vmul.f32 %v1289, 0.03125
    %v1434 = vmul.f32 %v1290, 0.03125
    %v1435 = vmul.f32 %v1291, 0.03125
    %v1436 = vmul.f32 %v1292, 0.03125
    %v1437 = vmul.f32 %v1293, 0.03125
    %v1438 = vmul.f32 %v1294, 0.03125
    %v1439 = vmul.f32 %v1295, 0.03125
    %v1440 = vmul.f32 %v1296, 0.03125
    %v1441 = vmul.f32 %v1297, 0.03125
    %v1442 = vmul.f32 %v1298, 0.03125
    %v1443 = vmul.f32 %v1299, 0.03125
    %v1444 = vmul.f32 %v1300, 0.03125
    %v1445 = vmul.f32 %v1301, 0.03125
    %v1446 = vmul.f32 %v1302, 0.03125
    %v1447 = vmul.f32 %v1303, 0.03125
    %v1448 = vmul.f32 %v1304, 0.03125
    %v1449 = vmul.f32 %v1305, 0.03125
    %v1450 = vmul.f32 %v1306, 0.03125
    %v1451 = vmul.f32 %v1307, 0.03125
    %v1452 = vmul.f32 %v1308, 0.03125
    %v1453 = vmul.f32 %v1309, 0.03125
    %v1454 = vmul.f32 %v1310, 0.03125
    %v1455 = vmul.f32 %v1311, 0.03125
    %v1456 = vmul.f32 %v1312, 0.03125
    %v1457 = vmul.f32 %v1313, 0.03125
    %v1458 = vmul.f32 %v1314, 0.03125
    %v1459 = vmul.f32 %v1315, 0.03125
    %v1460 = vmul.f32 %v1316, 0.03125
    %v1461 = vmul.f32 %v1317, 0.03125
    %v1462 = vmul.f32 %v1318, 0.03125
    %v1463 = vmul.f32 %v1319, 0.03125
    %v1464 = vmul.f32 %v1320, 0.03125
    %v1465 = vld [vmem:[%s2] sm:$0xff]
    %v1466 = vld [vmem:[%s2 + $0x8] sm:$0xff]
    %v1467 = vld [vmem:[%s2 + $0x10] sm:$0xff]
    %v1468 = vld [vmem:[%s2 + $0x18] sm:$0xff]
    %v1469 = vld [vmem:[%s2 + $0x20] sm:$0xff]
    %v1470 = vld [vmem:[%s2 + $0x28] sm:$0xff]
    %v1471 = vld [vmem:[%s2 + $0x30] sm:$0xff]
    %v1472 = vld [vmem:[%s2 + $0x38] sm:$0xff]
    %v1473 = vld [vmem:[%s2 + $0x40] sm:$0xff]
    %v1474 = vld [vmem:[%s2 + $0x48] sm:$0xff]
    %v1475 = vld [vmem:[%s2 + $0x50] sm:$0xff]
    %v1476 = vld [vmem:[%s2 + $0x58] sm:$0xff]
    %v1477 = vld [vmem:[%s2 + $0x60] sm:$0xff]
    %v1478 = vld [vmem:[%s2 + $0x68] sm:$0xff]
    %v1479 = vld [vmem:[%s2 + $0x70] sm:$0xff]
    %v1480 = vld [vmem:[%s2 + $0x78] sm:$0xff]
    %v1481 = vld [vmem:[%s2 + $0x80] sm:$0xff]
    %v1482 = vld [vmem:[%s2 + $0x88] sm:$0xff]
    %v1483 = vld [vmem:[%s2 + $0x90] sm:$0xff]
    %v1484 = vld [vmem:[%s2 + $0x98] sm:$0xff]
    %v1485 = vld [vmem:[%s2 + $0xa0] sm:$0xff]
    %v1486 = vld [vmem:[%s2 + $0xa8] sm:$0xff]
    %v1487 = vld [vmem:[%s2 + $0xb0] sm:$0xff]
    %v1488 = vld [vmem:[%s2 + $0xb8] sm:$0xff]
    %v1489 = vld [vmem:[%s2 + $0xc0] sm:$0xff]
    %v1490 = vld [vmem:[%s2 + $0xc8] sm:$0xff]
    %v1491 = vld [vmem:[%s2 + $0xd0] sm:$0xff]
    %v1492 = vld [vmem:[%s2 + $0xd8] sm:$0xff]
    %v1493 = vld [vmem:[%s2 + $0xe0] sm:$0xff]
    %v1494 = vld [vmem:[%s2 + $0xe8] sm:$0xff]
    %v1495 = vld [vmem:[%s2 + $0xf0] sm:$0xff]
    %v1496 = vld [vmem:[%s2 + $0xf8] sm:$0xff]
    %v1497 = vld [vmem:[%s2 + $0x100] sm:$0xff]
    %v1498 = vld [vmem:[%s2 + $0x108] sm:$0xff]
    %v1499 = vld [vmem:[%s2 + $0x110] sm:$0xff]
    %v1500 = vld [vmem:[%s2 + $0x118] sm:$0xff]
    %v1501 = vld [vmem:[%s2 + $0x120] sm:$0xff]
    %v1502 = vld [vmem:[%s2 + $0x128] sm:$0xff]
    %v1503 = vld [vmem:[%s2 + $0x130] sm:$0xff]
    %v1504 = vld [vmem:[%s2 + $0x138] sm:$0xff]
    %v1505 = vld [vmem:[%s2 + $0x140] sm:$0xff]
    %v1506 = vld [vmem:[%s2 + $0x148] sm:$0xff]
    %v1507 = vld [vmem:[%s2 + $0x150] sm:$0xff]
    %v1508 = vld [vmem:[%s2 + $0x158] sm:$0xff]
    %v1509 = vld [vmem:[%s2 + $0x160] sm:$0xff]
    %v1510 = vld [vmem:[%s2 + $0x168] sm:$0xff]
    %v1511 = vld [vmem:[%s2 + $0x170] sm:$0xff]
    %v1512 = vld [vmem:[%s2 + $0x178] sm:$0xff]
    %v1513 = vld [vmem:[%s2 + $0x180] sm:$0xff]
    %v1514 = vld [vmem:[%s2 + $0x188] sm:$0xff]
    %v1515 = vld [vmem:[%s2 + $0x190] sm:$0xff]
    %v1516 = vld [vmem:[%s2 + $0x198] sm:$0xff]
    %v1517 = vld [vmem:[%s2 + $0x1a0] sm:$0xff]
    %v1518 = vld [vmem:[%s2 + $0x1a8] sm:$0xff]
    %v1519 = vld [vmem:[%s2 + $0x1b0] sm:$0xff]
    %v1520 = vld [vmem:[%s2 + $0x1b8] sm:$0xff]
    %v1521 = vld [vmem:[%s2 + $0x1c0] sm:$0xff]
    %v1522 = vld [vmem:[%s2 + $0x1c8] sm:$0xff]
    %v1523 = vld [vmem:[%s2 + $0x1d0] sm:$0xff]
    %v1524 = vld [vmem:[%s2 + $0x1d8] sm:$0xff]
    %v1525 = vld [vmem:[%s2 + $0x1e0] sm:$0xff]
    %v1526 = vld [vmem:[%s2 + $0x1e8] sm:$0xff]
    %v1527 = vld [vmem:[%s2 + $0x1f0] sm:$0xff]
    %v1528 = vld [vmem:[%s2 + $0x1f8] sm:$0xff]
    %v1529 = vld [vmem:[%s2 + $0x200] sm:$0xff]
    %v1530 = vld [vmem:[%s2 + $0x208] sm:$0xff]
    %v1531 = vld [vmem:[%s2 + $0x210] sm:$0xff]
    %v1532 = vld [vmem:[%s2 + $0x218] sm:$0xff]
    %v1533 = vld [vmem:[%s2 + $0x220] sm:$0xff]
    %v1534 = vld [vmem:[%s2 + $0x228] sm:$0xff]
    %v1535 = vld [vmem:[%s2 + $0x230] sm:$0xff]
    %v1536 = vld [vmem:[%s2 + $0x238] sm:$0xff]
    %v1537 = vld [vmem:[%s3] sm:$0x1]
    %v1539 = vperm.slane %v1537, 0
    %v1685 = vlaneseq
    %v1686 = vand.u32 %v1685, 127
    %v1687 = vperm.slane %v1321, %v1686
    %v1688 = vadd.s32 %v1686, 4294967288
    %v1689 = vperm.slane %v1322, %v1688
    %vm1690 = vcmask 130112
    %v1691 = vsel %vm1690, %v1689, %v1687
    %v1692 = vadd.s32 %v1686, 4294967280
    %v1693 = vperm.slane %v1323, %v1692
    %vm1694 = vcmask 195712
    %v1695 = vsel %vm1694, %v1693, %v1691
    %v1696 = vadd.s32 %v1686, 4294967272
    %v1697 = vperm.slane %v1324, %v1696
    %vm1698 = vcmask 261312
    %v1699 = vsel %vm1698, %v1697, %v1695
    %v1700 = vadd.s32 %v1686, 4294967264
    %v1701 = vperm.slane %v1325, %v1700
    %vm1702 = vcmask 326912
    %v1703 = vsel %vm1702, %v1701, %v1699
    %v1704 = vadd.s32 %v1686, 4294967256
    %v1705 = vperm.slane %v1326, %v1704
    %vm1706 = vcmask 392512
    %v1707 = vsel %vm1706, %v1705, %v1703
    %v1708 = vadd.s32 %v1686, 4294967248
    %v1709 = vperm.slane %v1327, %v1708
    %vm1710 = vcmask 458112
    %v1711 = vsel %vm1710, %v1709, %v1707
    %v1712 = vadd.s32 %v1686, 4294967240
    %v1713 = vperm.slane %v1328, %v1712
    %vm1714 = vcmask 523712
    %v1715 = vsel %vm1714, %v1713, %v1711
    %v1716 = vadd.s32 %v1686, 4294967232
    %v1717 = vperm.slane %v1329, %v1716
    %vm1718 = vcmask 589312
    %v1719 = vsel %vm1718, %v1717, %v1715
    %v1720 = vadd.s32 %v1686, 4294967224
    %v1721 = vperm.slane %v1330, %v1720
    %vm1722 = vcmask 654912
    %v1723 = vsel %vm1722, %v1721, %v1719
    %v1724 = vadd.s32 %v1686, 4294967216
    %v1725 = vperm.slane %v1331, %v1724
    %vm1726 = vcmask 720512
    %v1727 = vsel %vm1726, %v1725, %v1723
    %v1728 = vadd.s32 %v1686, 4294967208
    %v1729 = vperm.slane %v1332, %v1728
    %vm1730 = vcmask 786112
    %v1731 = vsel %vm1730, %v1729, %v1727
    %v1732 = vadd.s32 %v1686, 4294967200
    %v1733 = vperm.slane %v1333, %v1732
    %vm1734 = vcmask 851712
    %v1735 = vsel %vm1734, %v1733, %v1731
    %v1736 = vadd.s32 %v1686, 4294967192
    %v1737 = vperm.slane %v1334, %v1736
    %vm1738 = vcmask 917312
    %v1739 = vsel %vm1738, %v1737, %v1735
    %v1740 = vadd.s32 %v1686, 4294967184
    %v1741 = vperm.slane %v1335, %v1740
    %vm1742 = vcmask 982912
    %v1743 = vsel %vm1742, %v1741, %v1739
    %v1744 = vadd.s32 %v1686, 4294967176
    %v1745 = vperm.slane %v1336, %v1744
    %vm1746 = vcmask 1048512
    %v1747 = vsel %vm1746, %v1745, %v1743
    %v1748 = vperm.slane %v1337, %v1686
    %v1749 = vperm.slane %v1338, %v1688
    %v1750 = vsel %vm1690, %v1749, %v1748
    %v1751 = vperm.slane %v1339, %v1692
    %v1752 = vsel %vm1694, %v1751, %v1750
    %v1753 = vperm.slane %v1340, %v1696
    %v1754 = vsel %vm1698, %v1753, %v1752
    %v1755 = vperm.slane %v1341, %v1700
    %v1756 = vsel %vm1702, %v1755, %v1754
    %v1757 = vperm.slane %v1342, %v1704
    %v1758 = vsel %vm1706, %v1757, %v1756
    %v1759 = vperm.slane %v1343, %v1708
    %v1760 = vsel %vm1710, %v1759, %v1758
    %v1761 = vperm.slane %v1344, %v1712
    %v1762 = vsel %vm1714, %v1761, %v1760
    %v1763 = vperm.slane %v1345, %v1716
    %v1764 = vsel %vm1718, %v1763, %v1762
    %v1765 = vperm.slane %v1346, %v1720
    %v1766 = vsel %vm1722, %v1765, %v1764
    %v1767 = vperm.slane %v1347, %v1724
    %v1768 = vsel %vm1726, %v1767, %v1766
    %v1769 = vperm.slane %v1348, %v1728
    %v1770 = vsel %vm1730, %v1769, %v1768
    %v1771 = vperm.slane %v1349, %v1732
    %v1772 = vsel %vm1734, %v1771, %v1770
    %v1773 = vperm.slane %v1350, %v1736
    %v1774 = vsel %vm1738, %v1773, %v1772
    %v1775 = vperm.slane %v1351, %v1740
    %v1776 = vsel %vm1742, %v1775, %v1774
    %v1777 = vperm.slane %v1352, %v1744
    %v1778 = vsel %vm1746, %v1777, %v1776
    %v1779 = vperm.slane %v1353, %v1686
    %v1780 = vperm.slane %v1354, %v1688
    %v1781 = vsel %vm1690, %v1780, %v1779
    %v1782 = vperm.slane %v1355, %v1692
    %v1783 = vsel %vm1694, %v1782, %v1781
    %v1784 = vperm.slane %v1356, %v1696
    %v1785 = vsel %vm1698, %v1784, %v1783
    %v1786 = vperm.slane %v1357, %v1700
    %v1787 = vsel %vm1702, %v1786, %v1785
    %v1788 = vperm.slane %v1358, %v1704
    %v1789 = vsel %vm1706, %v1788, %v1787
    %v1790 = vperm.slane %v1359, %v1708
    %v1791 = vsel %vm1710, %v1790, %v1789
    %v1792 = vperm.slane %v1360, %v1712
    %v1793 = vsel %vm1714, %v1792, %v1791
    %v1794 = vperm.slane %v1361, %v1716
    %v1795 = vsel %vm1718, %v1794, %v1793
    %v1796 = vperm.slane %v1362, %v1720
    %v1797 = vsel %vm1722, %v1796, %v1795
    %v1798 = vperm.slane %v1363, %v1724
    %v1799 = vsel %vm1726, %v1798, %v1797
    %v1800 = vperm.slane %v1364, %v1728
    %v1801 = vsel %vm1730, %v1800, %v1799
    %v1802 = vperm.slane %v1365, %v1732
    %v1803 = vsel %vm1734, %v1802, %v1801
    %v1804 = vperm.slane %v1366, %v1736
    %v1805 = vsel %vm1738, %v1804, %v1803
    %v1806 = vperm.slane %v1367, %v1740
    %v1807 = vsel %vm1742, %v1806, %v1805
    %v1808 = vperm.slane %v1368, %v1744
    %v1809 = vsel %vm1746, %v1808, %v1807
    %v1810 = vperm.slane %v1369, %v1686
    %v1811 = vperm.slane %v1370, %v1688
    %v1812 = vsel %vm1690, %v1811, %v1810
    %v1813 = vperm.slane %v1371, %v1692
    %v1814 = vsel %vm1694, %v1813, %v1812
    %v1815 = vperm.slane %v1372, %v1696
    %v1816 = vsel %vm1698, %v1815, %v1814
    %v1817 = vperm.slane %v1373, %v1700
    %v1818 = vsel %vm1702, %v1817, %v1816
    %v1819 = vperm.slane %v1374, %v1704
    %v1820 = vsel %vm1706, %v1819, %v1818
    %v1821 = vperm.slane %v1375, %v1708
    %v1822 = vsel %vm1710, %v1821, %v1820
    %v1823 = vperm.slane %v1376, %v1712
    %v1824 = vsel %vm1714, %v1823, %v1822
    %v1825 = vperm.slane %v1377, %v1716
    %v1826 = vsel %vm1718, %v1825, %v1824
    %v1827 = vperm.slane %v1378, %v1720
    %v1828 = vsel %vm1722, %v1827, %v1826
    %v1829 = vperm.slane %v1379, %v1724
    %v1830 = vsel %vm1726, %v1829, %v1828
    %v1831 = vperm.slane %v1380, %v1728
    %v1832 = vsel %vm1730, %v1831, %v1830
    %v1833 = vperm.slane %v1381, %v1732
    %v1834 = vsel %vm1734, %v1833, %v1832
    %v1835 = vperm.slane %v1382, %v1736
    %v1836 = vsel %vm1738, %v1835, %v1834
    %v1837 = vperm.slane %v1383, %v1740
    %v1838 = vsel %vm1742, %v1837, %v1836
    %v1839 = vperm.slane %v1384, %v1744
    %v1840 = vsel %vm1746, %v1839, %v1838
    %v1841 = vperm.slane %v1385, %v1686
    %v1842 = vperm.slane %v1386, %v1688
    %v1843 = vsel %vm1690, %v1842, %v1841
    %v1844 = vperm.slane %v1387, %v1692
    %v1845 = vsel %vm1694, %v1844, %v1843
    %v1846 = vperm.slane %v1388, %v1696
    %v1847 = vsel %vm1698, %v1846, %v1845
    %v1848 = vperm.slane %v1389, %v1700
    %v1849 = vsel %vm1702, %v1848, %v1847
    %v1850 = vperm.slane %v1390, %v1704
    %v1851 = vsel %vm1706, %v1850, %v1849
    %v1852 = vperm.slane %v1391, %v1708
    %v1853 = vsel %vm1710, %v1852, %v1851
    %v1854 = vperm.slane %v1392, %v1712
    %v1855 = vsel %vm1714, %v1854, %v1853
    %v1856 = vperm.slane %v1393, %v1686
    %v1857 = vperm.slane %v1394, %v1688
    %v1858 = vsel %vm1690, %v1857, %v1856
    %v1859 = vperm.slane %v1395, %v1692
    %v1860 = vsel %vm1694, %v1859, %v1858
    %v1861 = vperm.slane %v1396, %v1696
    %v1862 = vsel %vm1698, %v1861, %v1860
    %v1863 = vperm.slane %v1397, %v1700
    %v1864 = vsel %vm1702, %v1863, %v1862
    %v1865 = vperm.slane %v1398, %v1704
    %v1866 = vsel %vm1706, %v1865, %v1864
    %v1867 = vperm.slane %v1399, %v1708
    %v1868 = vsel %vm1710, %v1867, %v1866
    %v1869 = vperm.slane %v1400, %v1712
    %v1870 = vsel %vm1714, %v1869, %v1868
    %v1871 = vperm.slane %v1401, %v1716
    %v1872 = vsel %vm1718, %v1871, %v1870
    %v1873 = vperm.slane %v1402, %v1720
    %v1874 = vsel %vm1722, %v1873, %v1872
    %v1875 = vperm.slane %v1403, %v1724
    %v1876 = vsel %vm1726, %v1875, %v1874
    %v1877 = vperm.slane %v1404, %v1728
    %v1878 = vsel %vm1730, %v1877, %v1876
    %v1879 = vperm.slane %v1405, %v1732
    %v1880 = vsel %vm1734, %v1879, %v1878
    %v1881 = vperm.slane %v1406, %v1736
    %v1882 = vsel %vm1738, %v1881, %v1880
    %v1883 = vperm.slane %v1407, %v1740
    %v1884 = vsel %vm1742, %v1883, %v1882
    %v1885 = vperm.slane %v1408, %v1744
    %v1886 = vsel %vm1746, %v1885, %v1884
    %v1887 = vperm.slane %v1409, %v1686
    %v1888 = vperm.slane %v1410, %v1688
    %v1889 = vsel %vm1690, %v1888, %v1887
    %v1890 = vperm.slane %v1411, %v1692
    %v1891 = vsel %vm1694, %v1890, %v1889
    %v1892 = vperm.slane %v1412, %v1696
    %v1893 = vsel %vm1698, %v1892, %v1891
    %v1894 = vperm.slane %v1413, %v1700
    %v1895 = vsel %vm1702, %v1894, %v1893
    %v1896 = vperm.slane %v1414, %v1704
    %v1897 = vsel %vm1706, %v1896, %v1895
    %v1898 = vperm.slane %v1415, %v1708
    %v1899 = vsel %vm1710, %v1898, %v1897
    %v1900 = vperm.slane %v1416, %v1712
    %v1901 = vsel %vm1714, %v1900, %v1899
    %v1902 = vperm.slane %v1417, %v1716
    %v1903 = vsel %vm1718, %v1902, %v1901
    %v1904 = vperm.slane %v1418, %v1720
    %v1905 = vsel %vm1722, %v1904, %v1903
    %v1906 = vperm.slane %v1419, %v1724
    %v1907 = vsel %vm1726, %v1906, %v1905
    %v1908 = vperm.slane %v1420, %v1728
    %v1909 = vsel %vm1730, %v1908, %v1907
    %v1910 = vperm.slane %v1421, %v1732
    %v1911 = vsel %vm1734, %v1910, %v1909
    %v1912 = vperm.slane %v1422, %v1736
    %v1913 = vsel %vm1738, %v1912, %v1911
    %v1914 = vperm.slane %v1423, %v1740
    %v1915 = vsel %vm1742, %v1914, %v1913
    %v1916 = vperm.slane %v1424, %v1744
    %v1917 = vsel %vm1746, %v1916, %v1915
    %v1918 = vperm.slane %v1425, %v1686
    %v1919 = vperm.slane %v1426, %v1688
    %v1920 = vsel %vm1690, %v1919, %v1918
    %v1921 = vperm.slane %v1427, %v1692
    %v1922 = vsel %vm1694, %v1921, %v1920
    %v1923 = vperm.slane %v1428, %v1696
    %v1924 = vsel %vm1698, %v1923, %v1922
    %v1925 = vperm.slane %v1429, %v1700
    %v1926 = vsel %vm1702, %v1925, %v1924
    %v1927 = vperm.slane %v1430, %v1704
    %v1928 = vsel %vm1706, %v1927, %v1926
    %v1929 = vperm.slane %v1431, %v1708
    %v1930 = vsel %vm1710, %v1929, %v1928
    %v1931 = vperm.slane %v1432, %v1712
    %v1932 = vsel %vm1714, %v1931, %v1930
    %v1933 = vperm.slane %v1433, %v1716
    %v1934 = vsel %vm1718, %v1933, %v1932
    %v1935 = vperm.slane %v1434, %v1720
    %v1936 = vsel %vm1722, %v1935, %v1934
    %v1937 = vperm.slane %v1435, %v1724
    %v1938 = vsel %vm1726, %v1937, %v1936
    %v1939 = vperm.slane %v1436, %v1728
    %v1940 = vsel %vm1730, %v1939, %v1938
    %v1941 = vperm.slane %v1437, %v1732
    %v1942 = vsel %vm1734, %v1941, %v1940
    %v1943 = vperm.slane %v1438, %v1736
    %v1944 = vsel %vm1738, %v1943, %v1942
    %v1945 = vperm.slane %v1439, %v1740
    %v1946 = vsel %vm1742, %v1945, %v1944
    %v1947 = vperm.slane %v1440, %v1744
    %v1948 = vsel %vm1746, %v1947, %v1946
    %v1949 = vperm.slane %v1441, %v1686
    %v1950 = vperm.slane %v1442, %v1688
    %v1951 = vsel %vm1690, %v1950, %v1949
    %v1952 = vperm.slane %v1443, %v1692
    %v1953 = vsel %vm1694, %v1952, %v1951
    %v1954 = vperm.slane %v1444, %v1696
    %v1955 = vsel %vm1698, %v1954, %v1953
    %v1956 = vperm.slane %v1445, %v1700
    %v1957 = vsel %vm1702, %v1956, %v1955
    %v1958 = vperm.slane %v1446, %v1704
    %v1959 = vsel %vm1706, %v1958, %v1957
    %v1960 = vperm.slane %v1447, %v1708
    %v1961 = vsel %vm1710, %v1960, %v1959
    %v1962 = vperm.slane %v1448, %v1712
    %v1963 = vsel %vm1714, %v1962, %v1961
    %v1964 = vperm.slane %v1449, %v1716
    %v1965 = vsel %vm1718, %v1964, %v1963
    %v1966 = vperm.slane %v1450, %v1720
    %v1967 = vsel %vm1722, %v1966, %v1965
    %v1968 = vperm.slane %v1451, %v1724
    %v1969 = vsel %vm1726, %v1968, %v1967
    %v1970 = vperm.slane %v1452, %v1728
    %v1971 = vsel %vm1730, %v1970, %v1969
    %v1972 = vperm.slane %v1453, %v1732
    %v1973 = vsel %vm1734, %v1972, %v1971
    %v1974 = vperm.slane %v1454, %v1736
    %v1975 = vsel %vm1738, %v1974, %v1973
    %v1976 = vperm.slane %v1455, %v1740
    %v1977 = vsel %vm1742, %v1976, %v1975
    %v1978 = vperm.slane %v1456, %v1744
    %v1979 = vsel %vm1746, %v1978, %v1977
    %v1980 = vperm.slane %v1457, %v1686
    %v1981 = vperm.slane %v1458, %v1688
    %v1982 = vsel %vm1690, %v1981, %v1980
    %v1983 = vperm.slane %v1459, %v1692
    %v1984 = vsel %vm1694, %v1983, %v1982
    %v1985 = vperm.slane %v1460, %v1696
    %v1986 = vsel %vm1698, %v1985, %v1984
    %v1987 = vperm.slane %v1461, %v1700
    %v1988 = vsel %vm1702, %v1987, %v1986
    %v1989 = vperm.slane %v1462, %v1704
    %v1990 = vsel %vm1706, %v1989, %v1988
    %v1991 = vperm.slane %v1463, %v1708
    %v1992 = vsel %vm1710, %v1991, %v1990
    %v1993 = vperm.slane %v1464, %v1712
    %v1994 = vsel %vm1714, %v1993, %v1992
    %vm1995 = vcmask 1041409
    %v1996 = vsel %vm1995, %v1886, %v1747
    %v1997 = vsel %vm1995, %v1917, %v1778
    %v1998 = vsel %vm1995, %v1948, %v1809
    %v1999 = vsel %vm1995, %v1979, %v1840
    %v2000 = vsel %vm1995, %v1994, %v1855
    %vm2005 = vcmask 523264
    %v2006 = vsel %vm2005, %v2000, 0
    %2008 = vmatpush.msra.mxu0 %v1480
    %2009 = vmatpush.msra.mxu0 %v1479
    %2010 = vmatpush.msra.mxu0 %v1478
    %2011 = vmatpush.msra.mxu0 %v1477
    %2012 = vmatpush.msra.mxu0 %v1476
    %2013 = vmatpush.msra.mxu0 %v1475
    %2014 = vmatpush.msra.mxu0 %v1474
    %2015 = vmatpush.msra.mxu0 %v1473
    %2016 = vmatpush.msra.mxu0 %v1472
    %2017 = vmatpush.msra.mxu0 %v1471
    %2018 = vmatpush.msra.mxu0 %v1470
    %2019 = vmatpush.msra.mxu0 %v1469
    %2020 = vmatpush.msra.mxu0 %v1468
    %2021 = vmatpush.msra.mxu0 %v1467
    %2022 = vmatpush.msra.mxu0 %v1466
    %2023 = vmatpush.msra.mxu0 %v1465
    %2024 = vmatmul.f32.gmra.mxu0 %v1996
    %v2025 = vpop.f32.mrf.mxu0
    %v2026 = vadd.f32 %v1539, %v2025
    %2027 = vdwg.mxu0
    %2028 = vmatpush.msra.mxu0 %v1496
    %2029 = vmatpush.msra.mxu0 %v1495
    %2030 = vmatpush.msra.mxu0 %v1494
    %2031 = vmatpush.msra.mxu0 %v1493
    %2032 = vmatpush.msra.mxu0 %v1492
    %2033 = vmatpush.msra.mxu0 %v1491
    %2034 = vmatpush.msra.mxu0 %v1490
    %2035 = vmatpush.msra.mxu0 %v1489
    %2036 = vmatpush.msra.mxu0 %v1488
    %2037 = vmatpush.msra.mxu0 %v1487
    %2038 = vmatpush.msra.mxu0 %v1486
    %2039 = vmatpush.msra.mxu0 %v1485
    %2040 = vmatpush.msra.mxu0 %v1484
    %2041 = vmatpush.msra.mxu0 %v1483
    %2042 = vmatpush.msra.mxu0 %v1482
    %2043 = vmatpush.msra.mxu0 %v1481
    %2044 = vmatmul.f32.gmra.mxu0 %v1997
    %v2045 = vpop.f32.mrf.mxu0
    %v2046 = vadd.f32 %v2026, %v2045
    %2047 = vdwg.mxu0
    %2048 = vmatpush.msra.mxu0 %v1512
    %2049 = vmatpush.msra.mxu0 %v1511
    %2050 = vmatpush.msra.mxu0 %v1510
    %2051 = vmatpush.msra.mxu0 %v1509
    %2052 = vmatpush.msra.mxu0 %v1508
    %2053 = vmatpush.msra.mxu0 %v1507
    %2054 = vmatpush.msra.mxu0 %v1506
    %2055 = vmatpush.msra.mxu0 %v1505
    %2056 = vmatpush.msra.mxu0 %v1504
    %2057 = vmatpush.msra.mxu0 %v1503
    %2058 = vmatpush.msra.mxu0 %v1502
    %2059 = vmatpush.msra.mxu0 %v1501
    %2060 = vmatpush.msra.mxu0 %v1500
    %2061 = vmatpush.msra.mxu0 %v1499
    %2062 = vmatpush.msra.mxu0 %v1498
    %2063 = vmatpush.msra.mxu0 %v1497
    %2064 = vmatmul.f32.gmra.mxu0 %v1998
    %v2065 = vpop.f32.mrf.mxu0
    %v2066 = vadd.f32 %v2046, %v2065
    %2067 = vdwg.mxu0
    %2068 = vmatpush.msra.mxu0 %v1528
    %2069 = vmatpush.msra.mxu0 %v1527
    %2070 = vmatpush.msra.mxu0 %v1526
    %2071 = vmatpush.msra.mxu0 %v1525
    %2072 = vmatpush.msra.mxu0 %v1524
    %2073 = vmatpush.msra.mxu0 %v1523
    %2074 = vmatpush.msra.mxu0 %v1522
    %2075 = vmatpush.msra.mxu0 %v1521
    %2076 = vmatpush.msra.mxu0 %v1520
    %2077 = vmatpush.msra.mxu0 %v1519
    %2078 = vmatpush.msra.mxu0 %v1518
    %2079 = vmatpush.msra.mxu0 %v1517
    %2080 = vmatpush.msra.mxu0 %v1516
    %2081 = vmatpush.msra.mxu0 %v1515
    %2082 = vmatpush.msra.mxu0 %v1514
    %2083 = vmatpush.msra.mxu0 %v1513
    %2084 = vmatmul.f32.gmra.mxu0 %v1999
    %v2085 = vpop.f32.mrf.mxu0
    %v2086 = vadd.f32 %v2066, %v2085
    %2087 = vdwg.mxu0
    %2088 = vmatpush.msra.mxu0 0.0
    %2089 = vmatpush.msra.mxu0 0.0
    %2090 = vmatpush.msra.mxu0 0.0
    %2091 = vmatpush.msra.mxu0 0.0
    %2092 = vmatpush.msra.mxu0 0.0
    %2093 = vmatpush.msra.mxu0 0.0
    %2094 = vmatpush.msra.mxu0 0.0
    %2095 = vmatpush.msra.mxu0 0.0
    %2096 = vmatpush.msra.mxu0 %v1536
    %2097 = vmatpush.msra.mxu0 %v1535
    %2098 = vmatpush.msra.mxu0 %v1534
    %2099 = vmatpush.msra.mxu0 %v1533
    %2100 = vmatpush.msra.mxu0 %v1532
    %2101 = vmatpush.msra.mxu0 %v1531
    %2102 = vmatpush.msra.mxu0 %v1530
    %2103 = vmatpush.msra.mxu0 %v1529
    %2104 = vmatmul.f32.gmra.mxu0 %v2006
    %v2105 = vpop.f32.mrf.mxu0
    %v2106 = vadd.f32 %v2086, %v2105
    %2107 = vdwg.mxu0
    %v2108 = vmax.f32 %v2106, 0.0
    %v2109 = vld [vmem:[%s4] sm:$0xff]
    %v2110 = vld [vmem:[%s4 + $0x8] sm:$0xff]
    %v2111 = vld [vmem:[%s4 + $0x10] sm:$0xff]
    %v2112 = vld [vmem:[%s4 + $0x18] sm:$0xff]
    %v2113 = vld [vmem:[%s4 + $0x20] sm:$0xff]
    %v2114 = vld [vmem:[%s4 + $0x28] sm:$0xff]
    %v2115 = vld [vmem:[%s4 + $0x30] sm:$0xff]
    %v2116 = vld [vmem:[%s4 + $0x38] sm:$0xff]
    %v2117 = vld [vmem:[%s4 + $0x40] sm:$0xff]
    %v2118 = vld [vmem:[%s4 + $0x48] sm:$0xff]
    %v2119 = vld [vmem:[%s4 + $0x50] sm:$0xff]
    %v2120 = vld [vmem:[%s4 + $0x58] sm:$0xff]
    %v2121 = vld [vmem:[%s4 + $0x60] sm:$0xff]
    %v2122 = vld [vmem:[%s4 + $0x68] sm:$0xff]
    %v2123 = vld [vmem:[%s4 + $0x70] sm:$0xff]
    %v2124 = vld [vmem:[%s4 + $0x78] sm:$0xff]
    %v2125 = vld [vmem:[%s5] sm:$0x1]
    %v2127 = vperm.slane %v2125, 0
    %2129 = vmatpush.msra.mxu0 %v2124
    %2130 = vmatpush.msra.mxu0 %v2123
    %2131 = vmatpush.msra.mxu0 %v2122
    %2132 = vmatpush.msra.mxu0 %v2121
    %2133 = vmatpush.msra.mxu0 %v2120
    %2134 = vmatpush.msra.mxu0 %v2119
    %2135 = vmatpush.msra.mxu0 %v2118
    %2136 = vmatpush.msra.mxu0 %v2117
    %2137 = vmatpush.msra.mxu0 %v2116
    %2138 = vmatpush.msra.mxu0 %v2115
    %2139 = vmatpush.msra.mxu0 %v2114
    %2140 = vmatpush.msra.mxu0 %v2113
    %2141 = vmatpush.msra.mxu0 %v2112
    %2142 = vmatpush.msra.mxu0 %v2111
    %2143 = vmatpush.msra.mxu0 %v2110
    %2144 = vmatpush.msra.mxu0 %v2109
    %2145 = vmatmul.f32.gmra.mxu0 %v2108
    %v2146 = vpop.f32.mrf.mxu0
    %v2147 = vadd.f32 %v2127, %v2146
    %2148 = vdwg.mxu0
    %vm2149 = vcmask 74752
    %2150 = vst.msk [vmem:[#allocation2] sm:$0x3] %vm2149, %v2147
    // Predicated region
    $region26: #{tpu_custom_call.1} parent=1 // pred_check
      _
    $region27: #{tpu_custom_call.1} parent=1 // pred_check_branch
      %2152 = sbr.rel (0) target = $region29
    $region28: #{tpu_custom_call.1} parent=1 // pred_region
      %2154 = vsyncadd [#allocation3], 0
      %s2156 = sshll.u32 [#allocation2], 4
      %s2157 = int_to_ptr.vmem [resolvable:$true] %s2156
      %s2158 = sshll.u32 %s6, 4
      %s2159 = int_to_ptr.hbm [resolvable:$true] %s2158
      %2161 = dma.vmem_to_hbm [thread:$0]  %s2157, 32, %s2159, [#allocation3]
    $region29: #{tpu_custom_call.1} parent=1 // pred_fallthru
      _
    // Predicated region
    $region30: #{tpu_custom_call.1} parent=1 // pred_check
      _
    $region31: #{tpu_custom_call.1} parent=1 // pred_check_branch
      %2163 = sbr.rel (0) target = $region33
    $region32: #{tpu_custom_call.1} parent=1 // pred_region
      %2165 = dma.done [#allocation3], 32
    $region33: #{tpu_custom_call.1} parent=1 // pred_fallthru
      _
    %2166 = vsyncpa [#allocation3], 1

</llo_original>
